<compile_context>
chip_gen: v7x
topology: tpu7x:2x2x1
jax: 0.10.0
libtpu: 0.0.40
codegen_flags: <defaults>
</compile_context>

<pallas_src>
import functools

import jax
import jax.numpy as jnp
from jax.experimental import pallas as pl
from jax.experimental.pallas import tpu as pltpu

HIDDEN_SIZE = 512
INPUT_SIZE = 50
OUTPUT_SIZE = 10
BN_EPS = 1e-5

IN_PAD = 128          # fc1 contraction dim padded 50 -> 128 (tile-aligned, holds bias lane)
OUT_PAD = 128         # fc3 output dim padded 10 -> 128 (unmasked lane-dense stores)
BIAS_LANE = INPUT_SIZE  # column 50 of the padded input carries the constant 1.0
FUSED_MAX_ROWS = 512    # whole-batch-resident path above this switches to tiling


# ---------------------------------------------------------------------------
# Kernels
# ---------------------------------------------------------------------------

def _mlp_fused_kernel(x_ref, w1_ref, w2_ref, b2_ref, gamma_ref, beta_ref,
                      w3_ref, b3_ref, o_ref, *, batch, batch_pad):
    bf16 = jnp.bfloat16

    # fc1 (+ bias via the folded bias lane) -> ReLU.  bf16 operands, f32 MXU acc.
    h1 = jnp.maximum(
        jnp.dot(x_ref[...], w1_ref[...], preferred_element_type=jnp.float32), 0.0)

    # fc2 (dominant 512x512 matmul).
    h2 = jnp.dot(h1.astype(bf16), w2_ref[...],
                 preferred_element_type=jnp.float32) + b2_ref[...]

    # Single-pass BatchNorm1d training statistics (biased variance) over real rows.
    if batch_pad != batch:
        row = jax.lax.broadcasted_iota(jnp.int32, (batch_pad, 1), 0)
        h2m = jnp.where(row < batch, h2, 0.0)
    else:
        h2m = h2
    inv_b = 1.0 / batch
    mean = jnp.sum(h2m, axis=0, keepdims=True) * inv_b
    var = jnp.maximum(
        jnp.sum(h2m * h2m, axis=0, keepdims=True) * inv_b - mean * mean, 0.0)

    # Fold BN (+ affine) into per-feature scale/shift -> single FMA per element.
    inv = jax.lax.rsqrt(var + BN_EPS)              # EUP slot
    scale = gamma_ref[...] * inv                   # (1, 512)
    shift = beta_ref[...] - mean * scale           # (1, 512)
    h3 = jnp.maximum(h2 * scale + shift, 0.0)

    # fc3 into the lane-dense (128-wide, zero-padded) output tile.
    out = jnp.dot(h3.astype(bf16), w3_ref[...], preferred_element_type=jnp.float32)
    o_ref[...] = (out + b3_ref[...]).astype(o_ref.dtype)


def _mlp_stage1_kernel(x_ref, w1_ref, w2_ref, b2_ref, h2_ref, stats_ref,
                       *, batch, tb):
    """Batch-tiled pass 1: fc1 -> ReLU -> fc2 (+b2), per-tile sum / sum-of-squares."""
    bf16 = jnp.bfloat16
    h1 = jnp.maximum(
        jnp.dot(x_ref[...], w1_ref[...], preferred_element_type=jnp.float32), 0.0)
    h2 = jnp.dot(h1.astype(bf16), w2_ref[...],
                 preferred_element_type=jnp.float32) + b2_ref[...]
    h2_ref[...] = h2

    row = pl.program_id(0) * tb + jax.lax.broadcasted_iota(jnp.int32, (tb, 1), 0)
    h2m = jnp.where(row < batch, h2, 0.0)
    s1 = jnp.sum(h2m, axis=0, keepdims=True)        # (1, 512)
    s2 = jnp.sum(h2m * h2m, axis=0, keepdims=True)   # (1, 512)
    stats_ref[...] = jnp.concatenate([s1, s2], axis=0)[None, :, :]


def _mlp_stage2_kernel(h2_ref, scale_ref, shift_ref, w3_ref, b3_ref, o_ref):
    """Batch-tiled pass 2: folded BN scale/shift -> ReLU -> fc3."""
    bf16 = jnp.bfloat16
    h3 = jnp.maximum(h2_ref[...] * scale_ref[...] + shift_ref[...], 0.0)
    out = jnp.dot(h3.astype(bf16), w3_ref[...], preferred_element_type=jnp.float32)
    o_ref[...] = (out + b3_ref[...]).astype(o_ref.dtype)


# ---------------------------------------------------------------------------
# Wrappers
# ---------------------------------------------------------------------------

def prepare_params(params):
    """One-time layout prep: zero-pad, fold b1 into the fc1 bias lane, cast matmul
    operands to bf16.  Call once; reuse the result for every forward call."""
    w1, b1, w2, b2, gamma, beta, w3, b3 = params
    w1p = jnp.zeros((IN_PAD, HIDDEN_SIZE), jnp.float32)
    w1p = w1p.at[:INPUT_SIZE, :].set(w1).at[BIAS_LANE, :].set(b1[0])
    w3p = jnp.zeros((HIDDEN_SIZE, OUT_PAD), jnp.float32).at[:, :OUTPUT_SIZE].set(w3)
    b3p = jnp.zeros((1, OUT_PAD), jnp.float32).at[:, :OUTPUT_SIZE].set(b3)
    return dict(
        w1=w1p.astype(jnp.bfloat16),
        w2=w2.astype(jnp.bfloat16),
        b2=b2,
        gamma=gamma,
        beta=beta,
        w3=w3p.astype(jnp.bfloat16),
        b3=b3p,
    )


def _pad_inputs(x, b_pad):
    B, F = x.shape
    x_p = jnp.zeros((b_pad, IN_PAD), jnp.float32)
    x_p = x_p.at[:B, :F].set(x).at[:B, BIAS_LANE].set(1.0)   # bias lane = 1
    return x_p.astype(jnp.bfloat16)


def _forward_fused(x_p, prep, batch, b_pad):
    args = (x_p, prep["w1"], prep["w2"], prep["b2"], prep["gamma"],
            prep["beta"], prep["w3"], prep["b3"])
    full2 = lambda a: pl.BlockSpec(a.shape, lambda i: (0, 0))
    kernel = functools.partial(_mlp_fused_kernel, batch=batch, batch_pad=b_pad)
    return pl.pallas_call(
        kernel,
        out_shape=jax.ShapeDtypeStruct((b_pad, OUT_PAD), jnp.float32),
        grid=(1,),
        in_specs=[full2(a) for a in args],
        out_specs=pl.BlockSpec((b_pad, OUT_PAD), lambda i: (0, 0)),
    )(*args)


def _forward_tiled(x_p, prep, batch, tb):
    b_pad = x_p.shape[0]
    nb = b_pad // tb

    # Pass 1: fc1 + fc2, per-tile BN partial statistics (batch axis "parallel"
    # so v7x's two TensorCores split it; BlockSpec double-buffers the x DMA).
    h2, stats = pl.pallas_call(
        functools.partial(_mlp_stage1_kernel, batch=batch, tb=tb),
        out_shape=(jax.ShapeDtypeStruct((b_pad, HIDDEN_SIZE), jnp.float32),
                   jax.ShapeDtypeStruct((nb, 2, HIDDEN_SIZE), jnp.float32)),
        grid=(nb,),
        in_specs=[pl.BlockSpec((tb, IN_PAD), lambda i: (i, 0)),
                  pl.BlockSpec((IN_PAD, HIDDEN_SIZE), lambda i: (0, 0)),
                  pl.BlockSpec((HIDDEN_SIZE, HIDDEN_SIZE), lambda i: (0, 0)),
                  pl.BlockSpec((1, HIDDEN_SIZE), lambda i: (0, 0))],
        out_specs=(pl.BlockSpec((tb, HIDDEN_SIZE), lambda i: (i, 0)),
                   pl.BlockSpec((1, 2, HIDDEN_SIZE), lambda i: (i, 0, 0))),
        compiler_params=pltpu.CompilerParams(dimension_semantics=("parallel",)),
    )(x_p, prep["w1"], prep["w2"], prep["b2"])

    # Tiny (2,512) reduction + BN fold at the JAX level between the two passes.
    s = jnp.sum(stats, axis=0)
    inv_b = 1.0 / batch
    mean = s[0] * inv_b
    var = jnp.maximum(s[1] * inv_b - mean * mean, 0.0)
    inv = jax.lax.rsqrt(var + BN_EPS)
    scale = (prep["gamma"][0] * inv)[None, :]
    shift = (prep["beta"][0] - mean * prep["gamma"][0] * inv)[None, :]

    # Pass 2: normalize + ReLU + fc3.
    out = pl.pallas_call(
        _mlp_stage2_kernel,
        out_shape=jax.ShapeDtypeStruct((b_pad, OUT_PAD), jnp.float32),
        grid=(nb,),
        in_specs=[pl.BlockSpec((tb, HIDDEN_SIZE), lambda i: (i, 0)),
                  pl.BlockSpec((1, HIDDEN_SIZE), lambda i: (0, 0)),
                  pl.BlockSpec((1, HIDDEN_SIZE), lambda i: (0, 0)),
                  pl.BlockSpec((HIDDEN_SIZE, OUT_PAD), lambda i: (0, 0)),
                  pl.BlockSpec((1, OUT_PAD), lambda i: (0, 0))],
        out_specs=pl.BlockSpec((tb, OUT_PAD), lambda i: (i, 0)),
        compiler_params=pltpu.CompilerParams(dimension_semantics=("parallel",)),
    )(h2, scale, shift, prep["w3"], prep["b3"])
    return out


def mlp_forward(x, prep, *, tiled=None, tile_batch=256):
    """Forward pass.  `prep` is the cached output of prepare_params(params)."""
    B, F = x.shape
    assert F == INPUT_SIZE
    if tiled is None:
        tiled = B > FUSED_MAX_ROWS
    if not tiled:
        b_pad = max(8, ((B + 7) // 8) * 8)        # sublane-align the batch
        out = _forward_fused(_pad_inputs(x, b_pad), prep, B, b_pad)
    else:
        tb = tile_batch
        b_pad = ((B + tb - 1) // tb) * tb
        out = _forward_tiled(_pad_inputs(x, b_pad), prep, B, tb)
    return out[:B, :OUTPUT_SIZE]


# ---------------------------------------------------------------------------
# Params / reference
# ---------------------------------------------------------------------------

def init_params(key):
    # Deterministic init mimicking nn.Linear default (uniform +-1/sqrt(fan_in)).
    k1, k2, k3, k4, k5, k6 = jax.random.split(key, 6)

    def linear(kw, kb, fan_in, fan_out):
        bound = 1.0 / jnp.sqrt(jnp.float32(fan_in))
        w = jax.random.uniform(kw, (fan_in, fan_out), jnp.float32, -bound, bound)
        b = jax.random.uniform(kb, (1, fan_out), jnp.float32, -bound, bound)
        return w, b

    w1, b1 = linear(k1, k2, INPUT_SIZE, HIDDEN_SIZE)
    w2, b2 = linear(k3, k4, HIDDEN_SIZE, HIDDEN_SIZE)
    w3, b3 = linear(k5, k6, HIDDEN_SIZE, OUTPUT_SIZE)
    gamma = jnp.ones((1, HIDDEN_SIZE), jnp.float32)   # BatchNorm1d weight init
    beta = jnp.zeros((1, HIDDEN_SIZE), jnp.float32)   # BatchNorm1d bias init
    return (w1, b1, w2, b2, gamma, beta, w3, b3)


def mlp_reference(x, params):
    # Pure-JAX reference mirroring the kernel's bf16-operand / f32-accumulate
    # matmuls and bf16-rounded b1 (only numerical deviations from f32 PyTorch).
    w1, b1, w2, b2, gamma, beta, w3, b3 = params
    bf16, f32 = jnp.bfloat16, jnp.float32
    h1 = jnp.maximum(
        jnp.dot(x.astype(bf16), w1.astype(bf16), preferred_element_type=f32)
        + b1.astype(bf16).astype(f32), 0.0)
    h2 = jnp.dot(h1.astype(bf16), w2.astype(bf16), preferred_element_type=f32) + b2
    mean = jnp.mean(h2, axis=0, keepdims=True)
    var = jnp.mean((h2 - mean) ** 2, axis=0, keepdims=True)
    hn = (h2 - mean) * jax.lax.rsqrt(var + BN_EPS) * gamma + beta
    h3 = jnp.maximum(hn, 0.0)
    return jnp.dot(h3.astype(bf16), w3.astype(bf16), preferred_element_type=f32) + b3


if __name__ == "__main__":
    key = jax.random.PRNGKey(0)
    kx, kp, kx2 = jax.random.split(key, 3)
    params = init_params(kp)
    prep = prepare_params(params)            # one-time padded bf16 weights (cached)

    # Small demo batch (launch-bound): fused single-invocation kernel.
    B = 8
    x = jax.random.normal(kx, (B, INPUT_SIZE), jnp.float32)
    out = mlp_forward(x, prep)
    jax.block_until_ready(out)
    ref = mlp_reference(x, params)
    assert out.shape == (B, OUTPUT_SIZE)
    assert jnp.allclose(out, ref, atol=5e-3, rtol=5e-3), \
        float(jnp.max(jnp.abs(out - ref)))

    # Training-size batch: batch-tiled two-pass BN path (exercises ragged last
    # tile / row masking and the "parallel" batch grid axis).
    B2 = 300
    x2 = jax.random.normal(kx2, (B2, INPUT_SIZE), jnp.float32)
    out2 = mlp_forward(x2, prep, tiled=True, tile_batch=128)
    jax.block_until_ready(out2)
    ref2 = mlp_reference(x2, params)
    assert out2.shape == (B2, OUTPUT_SIZE)
    assert jnp.allclose(out2, ref2, atol=5e-3, rtol=5e-3), \
        float(jnp.max(jnp.abs(out2 - ref2)))

    print("KERNEL_OK")
</pallas_src>

<mosaic_0001>
module attributes {stable_mosaic.version = 11 : i64} {
  func.func @_mlp_fused_kernel(%arg0: i32, %arg1: memref<8x128xbf16, #tpu.memory_space<vmem>>, %arg2: memref<128x512xbf16, #tpu.memory_space<vmem>>, %arg3: memref<512x512xbf16, #tpu.memory_space<vmem>>, %arg4: memref<1x512xf32, #tpu.memory_space<vmem>>, %arg5: memref<1x512xf32, #tpu.memory_space<vmem>>, %arg6: memref<1x512xf32, #tpu.memory_space<vmem>>, %arg7: memref<512x128xbf16, #tpu.memory_space<vmem>>, %arg8: memref<1x128xf32, #tpu.memory_space<vmem>>, %arg9: memref<8x128xf32, #tpu.memory_space<vmem>>) attributes {dimension_semantics = [#tpu.dimension_semantics<arbitrary>], iteration_bounds = array<i64: 1>, scalar_prefetch = 0 : i64, scratch_operands = 0 : i64, tpu.core_type = #tpu.core_type<tc>, window_params = [{pipeline_mode = #tpu.pipeline_mode<synchronous>, transform_indices = @transform_0, window_bounds = array<i64: 8, 128>}, {pipeline_mode = #tpu.pipeline_mode<synchronous>, transform_indices = @transform_1, window_bounds = array<i64: 128, 512>}, {pipeline_mode = #tpu.pipeline_mode<synchronous>, transform_indices = @transform_2, window_bounds = array<i64: 512, 512>}, {pipeline_mode = #tpu.pipeline_mode<synchronous>, transform_indices = @transform_3, window_bounds = array<i64: 1, 512>}, {pipeline_mode = #tpu.pipeline_mode<synchronous>, transform_indices = @transform_4, window_bounds = array<i64: 1, 512>}, {pipeline_mode = #tpu.pipeline_mode<synchronous>, transform_indices = @transform_5, window_bounds = array<i64: 1, 512>}, {pipeline_mode = #tpu.pipeline_mode<synchronous>, transform_indices = @transform_6, window_bounds = array<i64: 512, 128>}, {pipeline_mode = #tpu.pipeline_mode<synchronous>, transform_indices = @transform_7, window_bounds = array<i64: 1, 128>}, {pipeline_mode = #tpu.pipeline_mode<synchronous>, transform_indices = @transform_8, window_bounds = array<i64: 8, 128>}]} {
    %c0 = arith.constant 0 : index
    %c0_0 = arith.constant 0 : index
    %0 = vector.load %arg1[%c0, %c0_0] : memref<8x128xbf16, #tpu.memory_space<vmem>>, vector<8x128xbf16>
    %c0_1 = arith.constant 0 : index
    %c0_2 = arith.constant 0 : index
    %1 = vector.load %arg2[%c0_1, %c0_2] : memref<128x512xbf16, #tpu.memory_space<vmem>>, vector<128x512xbf16>
    %cst = arith.constant dense<0.000000e+00> : vector<8x512xf32>
    %2 = tpu.matmul %0, %1, %cst {dimension_numbers = #tpu.dot_dimension_numbers<[1], [0], [0], [1], [0, 0, 1, 1], [], []>} : vector<8x128xbf16>, vector<128x512xbf16>, vector<8x512xf32> -> vector<8x512xf32>
    %cst_3 = arith.constant 0.000000e+00 : f32
    %3 = vector.broadcast %cst_3 : f32 to vector<8x512xf32>
    %4 = arith.maximumf %2, %3 : vector<8x512xf32>
    %5 = arith.truncf %4 : vector<8x512xf32> to vector<8x512xbf16>
    %c0_4 = arith.constant 0 : index
    %c0_5 = arith.constant 0 : index
    %6 = vector.load %arg3[%c0_4, %c0_5] : memref<512x512xbf16, #tpu.memory_space<vmem>>, vector<512x512xbf16>
    %cst_6 = arith.constant dense<0.000000e+00> : vector<8x512xf32>
    %7 = tpu.matmul %5, %6, %cst_6 {dimension_numbers = #tpu.dot_dimension_numbers<[1], [0], [0], [1], [0, 0, 1, 1], [], []>} : vector<8x512xbf16>, vector<512x512xbf16>, vector<8x512xf32> -> vector<8x512xf32>
    %c0_7 = arith.constant 0 : index
    %c0_8 = arith.constant 0 : index
    %8 = vector.load %arg4[%c0_7, %c0_8] : memref<1x512xf32, #tpu.memory_space<vmem>>, vector<1x512xf32>
    %9 = vector.broadcast %8 : vector<1x512xf32> to vector<8x512xf32>
    %10 = arith.addf %7, %9 : vector<8x512xf32>
    %cst_9 = arith.constant dense<0.000000e+00> : vector<512xf32>
    %11 = vector.multi_reduction <add>, %10, %cst_9 [0] : vector<8x512xf32> to vector<512xf32>
    %12 = vector.shape_cast %11 : vector<512xf32> to vector<1x512xf32>
    %cst_10 = arith.constant 1.250000e-01 : f32
    %13 = vector.broadcast %cst_10 : f32 to vector<1x512xf32>
    %14 = arith.mulf %12, %13 : vector<1x512xf32>
    %15 = arith.mulf %10, %10 : vector<8x512xf32>
    %cst_11 = arith.constant dense<0.000000e+00> : vector<512xf32>
    %16 = vector.multi_reduction <add>, %15, %cst_11 [0] : vector<8x512xf32> to vector<512xf32>
    %17 = vector.shape_cast %16 : vector<512xf32> to vector<1x512xf32>
    %cst_12 = arith.constant 1.250000e-01 : f32
    %18 = vector.broadcast %cst_12 : f32 to vector<1x512xf32>
    %19 = arith.mulf %17, %18 : vector<1x512xf32>
    %20 = arith.mulf %14, %14 : vector<1x512xf32>
    %21 = arith.subf %19, %20 : vector<1x512xf32>
    %cst_13 = arith.constant 0.000000e+00 : f32
    %22 = vector.broadcast %cst_13 : f32 to vector<1x512xf32>
    %23 = arith.maximumf %21, %22 : vector<1x512xf32>
    %cst_14 = arith.constant 9.99999974E-6 : f32
    %24 = vector.broadcast %cst_14 : f32 to vector<1x512xf32>
    %25 = arith.addf %23, %24 : vector<1x512xf32>
    %26 = math.rsqrt %25 : vector<1x512xf32>
    %c0_15 = arith.constant 0 : index
    %c0_16 = arith.constant 0 : index
    %27 = vector.load %arg5[%c0_15, %c0_16] : memref<1x512xf32, #tpu.memory_space<vmem>>, vector<1x512xf32>
    %28 = arith.mulf %27, %26 : vector<1x512xf32>
    %c0_17 = arith.constant 0 : index
    %c0_18 = arith.constant 0 : index
    %29 = vector.load %arg6[%c0_17, %c0_18] : memref<1x512xf32, #tpu.memory_space<vmem>>, vector<1x512xf32>
    %30 = arith.mulf %14, %28 : vector<1x512xf32>
    %31 = arith.subf %29, %30 : vector<1x512xf32>
    %32 = vector.broadcast %28 : vector<1x512xf32> to vector<8x512xf32>
    %33 = arith.mulf %10, %32 : vector<8x512xf32>
    %34 = vector.broadcast %31 : vector<1x512xf32> to vector<8x512xf32>
    %35 = arith.addf %33, %34 : vector<8x512xf32>
    %cst_19 = arith.constant 0.000000e+00 : f32
    %36 = vector.broadcast %cst_19 : f32 to vector<8x512xf32>
    %37 = arith.maximumf %35, %36 : vector<8x512xf32>
    %38 = arith.truncf %37 : vector<8x512xf32> to vector<8x512xbf16>
    %c0_20 = arith.constant 0 : index
    %c0_21 = arith.constant 0 : index
    %39 = vector.load %arg7[%c0_20, %c0_21] : memref<512x128xbf16, #tpu.memory_space<vmem>>, vector<512x128xbf16>
    %cst_22 = arith.constant dense<0.000000e+00> : vector<8x128xf32>
    %40 = tpu.matmul %38, %39, %cst_22 {dimension_numbers = #tpu.dot_dimension_numbers<[1], [0], [0], [1], [0, 0, 1, 1], [], []>} : vector<8x512xbf16>, vector<512x128xbf16>, vector<8x128xf32> -> vector<8x128xf32>
    %c0_23 = arith.constant 0 : index
    %c0_24 = arith.constant 0 : index
    %41 = vector.load %arg8[%c0_23, %c0_24] : memref<1x128xf32, #tpu.memory_space<vmem>>, vector<1x128xf32>
    %42 = vector.broadcast %41 : vector<1x128xf32> to vector<8x128xf32>
    %43 = arith.addf %40, %42 : vector<8x128xf32>
    %c0_25 = arith.constant 0 : index
    %c0_26 = arith.constant 0 : index
    %44 = vector.load %arg9[%c0_25, %c0_26] : memref<8x128xf32, #tpu.memory_space<vmem>>, vector<8x128xf32>
    tpu.vector_store %arg9[%c0_25, %c0_26], %43 {strides = array<i32>} : memref<8x128xf32, #tpu.memory_space<vmem>>, vector<8x128xf32>,
    return
  }
  func.func @transform_0(%arg0: i32) -> (i32, i32) {
    %c0_i32 = arith.constant 0 : i32
    %c0_i32_0 = arith.constant 0 : i32
    %c0_i32_1 = arith.constant 0 : i32
    return %c0_i32, %c0_i32_0 : i32, i32
  }
  func.func @transform_1(%arg0: i32) -> (i32, i32) {
    %c0_i32 = arith.constant 0 : i32
    %c0_i32_0 = arith.constant 0 : i32
    %c0_i32_1 = arith.constant 0 : i32
    return %c0_i32, %c0_i32_0 : i32, i32
  }
  func.func @transform_2(%arg0: i32) -> (i32, i32) {
    %c0_i32 = arith.constant 0 : i32
    %c0_i32_0 = arith.constant 0 : i32
    %c0_i32_1 = arith.constant 0 : i32
    return %c0_i32, %c0_i32_0 : i32, i32
  }
  func.func @transform_3(%arg0: i32) -> (i32, i32) {
    %c0_i32 = arith.constant 0 : i32
    %c0_i32_0 = arith.constant 0 : i32
    %c0_i32_1 = arith.constant 0 : i32
    return %c0_i32, %c0_i32_0 : i32, i32
  }
  func.func @transform_4(%arg0: i32) -> (i32, i32) {
    %c0_i32 = arith.constant 0 : i32
    %c0_i32_0 = arith.constant 0 : i32
    %c0_i32_1 = arith.constant 0 : i32
    return %c0_i32, %c0_i32_0 : i32, i32
  }
  func.func @transform_5(%arg0: i32) -> (i32, i32) {
    %c0_i32 = arith.constant 0 : i32
    %c0_i32_0 = arith.constant 0 : i32
    %c0_i32_1 = arith.constant 0 : i32
    return %c0_i32, %c0_i32_0 : i32, i32
  }
  func.func @transform_6(%arg0: i32) -> (i32, i32) {
    %c0_i32 = arith.constant 0 : i32
    %c0_i32_0 = arith.constant 0 : i32
    %c0_i32_1 = arith.constant 0 : i32
    return %c0_i32, %c0_i32_0 : i32, i32
  }
  func.func @transform_7(%arg0: i32) -> (i32, i32) {
    %c0_i32 = arith.constant 0 : i32
    %c0_i32_0 = arith.constant 0 : i32
    %c0_i32_1 = arith.constant 0 : i32
    return %c0_i32, %c0_i32_0 : i32, i32
  }
  func.func @transform_8(%arg0: i32) -> (i32, i32) {
    %c0_i32 = arith.constant 0 : i32
    %c0_i32_0 = arith.constant 0 : i32
    %c0_i32_1 = arith.constant 0 : i32
    return %c0_i32, %c0_i32_0 : i32, i32
  }
}

</mosaic_0001>

<llo_original>
// kernel: tpu_custom_call.1
$region0: #{tpu_custom_call.1}
  #allocation0 [shape = 'u32[]', space=smem, size = 0x4, offset = 0x4, fixed_abs, tag = 'smem constant byte address 0x4 - core index']
  #allocation1 [shape = 'u32[144,128]{1,0:T(1,128)}', space=vmem, size = 0x12000, scoped, tag = 'internal scratch']
  %s0 = inlined_call_operand.hbm [shape: bf16[8,128], index: 0, kind: input, shape index: {}]
  %s1 = inlined_call_operand.hbm [shape: bf16[128,512], index: 1, kind: input, shape index: {}]
  %s2 = inlined_call_operand.hbm [shape: bf16[512,512], index: 2, kind: input, shape index: {}]
  %s3 = inlined_call_operand.vmem [shape: f32[1,512], index: 3, kind: input, shape index: {}]
  %s4 = inlined_call_operand.vmem [shape: f32[1,512], index: 4, kind: input, shape index: {}]
  %s5 = inlined_call_operand.vmem [shape: f32[1,512], index: 5, kind: input, shape index: {}]
  %s6 = inlined_call_operand.hbm [shape: bf16[512,128], index: 6, kind: input, shape index: {}]
  %s7 = inlined_call_operand.vmem [shape: f32[1,128], index: 7, kind: input, shape index: {}]
  %s8 = inlined_call_operand.hbm [shape: f32[8,128], index: 8, kind: output, shape index: {}]
  %s9 = sld [smem:[#allocation0]]
  $region58: #{tpu_custom_call.1} parent=0
    _
  %s11 = ssub.s32 1, %s9
  %s12 = scalar_select 0, %s11, %s9
  $region1: #{tpu_custom_call.1} parent=0
    #allocation2 [shape = 'u8[2048]{0}', space=vmem, size = 0x800, scoped, tag = 'input window, operand 0, single buffered']
    #allocation3 [shape = 's32[1]{0}', space=sflag, size = 0x4, scoped, tag = 'scoped memory for tpu_custom_call.1']
    #allocation4 [shape = 's32[1]{0}', space=sflag, size = 0x4, scoped, tag = 'scoped memory for tpu_custom_call.1']
    #allocation5 [shape = 'u8[131072]{0}', space=vmem, size = 0x20000, scoped, tag = 'input window, operand 1, single buffered']
    #allocation6 [shape = 's32[1]{0}', space=sflag, size = 0x4, scoped, tag = 'scoped memory for tpu_custom_call.1']
    #allocation7 [shape = 'u8[524288]{0}', space=vmem, size = 0x80000, scoped, tag = 'input window, operand 2, single buffered']
    #allocation8 [shape = 'u8[131072]{0}', space=vmem, size = 0x20000, scoped, tag = 'input window, operand 6, single buffered']
    #allocation9 [shape = 's32[1]{0}', space=sflag, size = 0x4, scoped, tag = 'scoped memory for tpu_custom_call.1']
    #allocation10 [shape = 'u8[4096]{0}', space=vmem, size = 0x1000, scoped, tag = 'output window, operand 0, single buffered']
    %13 = vsyncpa [#allocation3], 0
    %14 = vsyncpa [#allocation6], 0
    %15 = vsyncpa [#allocation9], 0
    %16 = vsyncpa [#allocation4], 0
    // Predicated region
    $region2: #{tpu_custom_call.1} parent=1 // pred_check
      _
    $region3: #{tpu_custom_call.1} parent=1 // pred_check_branch
      %18 = sbr.rel (0) target = $region5
    $region4: #{tpu_custom_call.1} parent=1 // pred_region
      %s20 = ssub.s32 64, 64
      %21 = vsyncadd [#allocation3], %s20
      %s23 = sshll.u32 [#allocation2], 4
      %s24 = int_to_ptr.vmem [resolvable:$true] %s23
      %26 = dma.hbm_to_vmem [thread:$0]  %s0, 64, %s24, [#allocation3]
    $region5: #{tpu_custom_call.1} parent=1 // pred_fallthru
      _
    // Predicated region
    $region6: #{tpu_custom_call.1} parent=1 // pred_check
      _
    $region7: #{tpu_custom_call.1} parent=1 // pred_check_branch
      %28 = sbr.rel (0) target = $region9
    $region8: #{tpu_custom_call.1} parent=1 // pred_region
      %s30 = ssub.s32 4096, 4096
      %31 = vsyncadd [#allocation6], %s30
      %s32 = sshll.u32 [#allocation5], 4
      %s33 = int_to_ptr.vmem [resolvable:$true] %s32
      %38 = dma.hbm_to_vmem [thread:$0]  %s1, 4096, %s33, [#allocation6], 256, 256, 16
    $region9: #{tpu_custom_call.1} parent=1 // pred_fallthru
      _
    // Predicated region
    $region10: #{tpu_custom_call.1} parent=1 // pred_check
      _
    $region11: #{tpu_custom_call.1} parent=1 // pred_check_branch
      %40 = sbr.rel (0) target = $region13
    $region12: #{tpu_custom_call.1} parent=1 // pred_region
      %s42 = ssub.s32 16384, 16384
      %43 = vsyncadd [#allocation6], %s42
      %s44 = sshll.u32 [#allocation7], 4
      %s45 = int_to_ptr.vmem [resolvable:$true] %s44
      %50 = dma.hbm_to_vmem [thread:$0]  %s2, 16384, %s45, [#allocation6], 256, 256, 16
    $region13: #{tpu_custom_call.1} parent=1 // pred_fallthru
      _
    // Predicated region
    $region14: #{tpu_custom_call.1} parent=1 // pred_check
      _
    $region15: #{tpu_custom_call.1} parent=1 // pred_check_branch
      %52 = sbr.rel (0) target = $region17
    $region16: #{tpu_custom_call.1} parent=1 // pred_region
      _
    $region17: #{tpu_custom_call.1} parent=1 // pred_fallthru
      _
    // Predicated region
    $region18: #{tpu_custom_call.1} parent=1 // pred_check
      _
    $region19: #{tpu_custom_call.1} parent=1 // pred_check_branch
      %54 = sbr.rel (0) target = $region21
    $region20: #{tpu_custom_call.1} parent=1 // pred_region
      _
    $region21: #{tpu_custom_call.1} parent=1 // pred_fallthru
      _
    // Predicated region
    $region22: #{tpu_custom_call.1} parent=1 // pred_check
      _
    $region23: #{tpu_custom_call.1} parent=1 // pred_check_branch
      %56 = sbr.rel (0) target = $region25
    $region24: #{tpu_custom_call.1} parent=1 // pred_region
      _
    $region25: #{tpu_custom_call.1} parent=1 // pred_fallthru
      _
    // Predicated region
    $region26: #{tpu_custom_call.1} parent=1 // pred_check
      _
    $region27: #{tpu_custom_call.1} parent=1 // pred_check_branch
      %58 = sbr.rel (0) target = $region29
    $region28: #{tpu_custom_call.1} parent=1 // pred_region
      %s60 = ssub.s32 4096, 4096
      %61 = vsyncadd [#allocation9], %s60
      %s62 = sshll.u32 [#allocation8], 4
      %s63 = int_to_ptr.vmem [resolvable:$true] %s62
      %68 = dma.hbm_to_vmem [thread:$0]  %s6, 4096, %s63, [#allocation9], 64, 64, 4
    $region29: #{tpu_custom_call.1} parent=1 // pred_fallthru
      _
    // Predicated region
    $region30: #{tpu_custom_call.1} parent=1 // pred_check
      _
    $region31: #{tpu_custom_call.1} parent=1 // pred_check_branch
      %70 = sbr.rel (0) target = $region33
    $region32: #{tpu_custom_call.1} parent=1 // pred_region
      _
    $region33: #{tpu_custom_call.1} parent=1 // pred_fallthru
      _
    // Predicated region
    $region34: #{tpu_custom_call.1} parent=1 // pred_check
      _
    $region35: #{tpu_custom_call.1} parent=1 // pred_check_branch
      %72 = sbr.rel (0) target = $region37
    $region36: #{tpu_custom_call.1} parent=1 // pred_region
      %73 = dma.done [#allocation3], 64
    $region37: #{tpu_custom_call.1} parent=1 // pred_fallthru
      _
    // Predicated region
    $region38: #{tpu_custom_call.1} parent=1 // pred_check
      _
    $region39: #{tpu_custom_call.1} parent=1 // pred_check_branch
      %75 = sbr.rel (0) target = $region41
    $region40: #{tpu_custom_call.1} parent=1 // pred_region
      %76 = dma.done [#allocation6], 4096
    $region41: #{tpu_custom_call.1} parent=1 // pred_fallthru
      _
    // Predicated region
    $region42: #{tpu_custom_call.1} parent=1 // pred_check
      _
    $region43: #{tpu_custom_call.1} parent=1 // pred_check_branch
      %78 = sbr.rel (0) target = $region45
    $region44: #{tpu_custom_call.1} parent=1 // pred_region
      %79 = dma.done [#allocation6], 16384
    $region45: #{tpu_custom_call.1} parent=1 // pred_fallthru
      _
    // Predicated region
    $region46: #{tpu_custom_call.1} parent=1 // pred_check
      _
    $region47: #{tpu_custom_call.1} parent=1 // pred_check_branch
      %81 = sbr.rel (0) target = $region49
    $region48: #{tpu_custom_call.1} parent=1 // pred_region
      %82 = dma.done [#allocation9], 4096
    $region49: #{tpu_custom_call.1} parent=1 // pred_fallthru
      _
    %v84 = vld [vmem:[#allocation2] sm:$0xf]
    %v85 = vld [vmem:[#allocation5] sm:$0xff]
    %v86 = vld [vmem:[#allocation5 + $0x8] sm:$0xff]
    %v87 = vld [vmem:[#allocation5 + $0x10] sm:$0xff]
    %v88 = vld [vmem:[#allocation5 + $0x18] sm:$0xff]
    %v89 = vld [vmem:[#allocation5 + $0x20] sm:$0xff]
    %v90 = vld [vmem:[#allocation5 + $0x28] sm:$0xff]
    %v91 = vld [vmem:[#allocation5 + $0x30] sm:$0xff]
    %v92 = vld [vmem:[#allocation5 + $0x38] sm:$0xff]
    %v93 = vld [vmem:[#allocation5 + $0x40] sm:$0xff]
    %v94 = vld [vmem:[#allocation5 + $0x48] sm:$0xff]
    %v95 = vld [vmem:[#allocation5 + $0x50] sm:$0xff]
    %v96 = vld [vmem:[#allocation5 + $0x58] sm:$0xff]
    %v97 = vld [vmem:[#allocation5 + $0x60] sm:$0xff]
    %v98 = vld [vmem:[#allocation5 + $0x68] sm:$0xff]
    %v99 = vld [vmem:[#allocation5 + $0x70] sm:$0xff]
    %v100 = vld [vmem:[#allocation5 + $0x78] sm:$0xff]
    %v101 = vld [vmem:[#allocation5 + $0x80] sm:$0xff]
    %v102 = vld [vmem:[#allocation5 + $0x88] sm:$0xff]
    %v103 = vld [vmem:[#allocation5 + $0x90] sm:$0xff]
    %v104 = vld [vmem:[#allocation5 + $0x98] sm:$0xff]
    %v105 = vld [vmem:[#allocation5 + $0xa0] sm:$0xff]
    %v106 = vld [vmem:[#allocation5 + $0xa8] sm:$0xff]
    %v107 = vld [vmem:[#allocation5 + $0xb0] sm:$0xff]
    %v108 = vld [vmem:[#allocation5 + $0xb8] sm:$0xff]
    %v109 = vld [vmem:[#allocation5 + $0xc0] sm:$0xff]
    %v110 = vld [vmem:[#allocation5 + $0xc8] sm:$0xff]
    %v111 = vld [vmem:[#allocation5 + $0xd0] sm:$0xff]
    %v112 = vld [vmem:[#allocation5 + $0xd8] sm:$0xff]
    %v113 = vld [vmem:[#allocation5 + $0xe0] sm:$0xff]
    %v114 = vld [vmem:[#allocation5 + $0xe8] sm:$0xff]
    %v115 = vld [vmem:[#allocation5 + $0xf0] sm:$0xff]
    %v116 = vld [vmem:[#allocation5 + $0xf8] sm:$0xff]
    %v149 = vunpack.c.l.b16 %v85
    %v150 = vunpack.c.h.b16 %v85
    %v151 = vunpack.c.l.b16 %v86
    %v152 = vunpack.c.h.b16 %v86
    %v153 = vunpack.c.l.b16 %v87
    %v154 = vunpack.c.h.b16 %v87
    %v155 = vunpack.c.l.b16 %v88
    %v156 = vunpack.c.h.b16 %v88
    %v157 = vunpack.c.l.b16 %v89
    %v158 = vunpack.c.h.b16 %v89
    %v159 = vunpack.c.l.b16 %v90
    %v160 = vunpack.c.h.b16 %v90
    %v161 = vunpack.c.l.b16 %v91
    %v162 = vunpack.c.h.b16 %v91
    %v163 = vunpack.c.l.b16 %v92
    %v164 = vunpack.c.h.b16 %v92
    %v165 = vunpack.c.l.b16 %v93
    %v166 = vunpack.c.h.b16 %v93
    %v167 = vunpack.c.l.b16 %v94
    %v168 = vunpack.c.h.b16 %v94
    %v169 = vunpack.c.l.b16 %v95
    %v170 = vunpack.c.h.b16 %v95
    %v171 = vunpack.c.l.b16 %v96
    %v172 = vunpack.c.h.b16 %v96
    %v173 = vunpack.c.l.b16 %v97
    %v174 = vunpack.c.h.b16 %v97
    %v175 = vunpack.c.l.b16 %v98
    %v176 = vunpack.c.h.b16 %v98
    %v177 = vunpack.c.l.b16 %v99
    %v178 = vunpack.c.h.b16 %v99
    %v179 = vunpack.c.l.b16 %v100
    %v180 = vunpack.c.h.b16 %v100
    %v181 = vunpack.c.l.b16 %v101
    %v182 = vunpack.c.h.b16 %v101
    %v183 = vunpack.c.l.b16 %v102
    %v184 = vunpack.c.h.b16 %v102
    %v185 = vunpack.c.l.b16 %v103
    %v186 = vunpack.c.h.b16 %v103
    %v187 = vunpack.c.l.b16 %v104
    %v188 = vunpack.c.h.b16 %v104
    %v189 = vunpack.c.l.b16 %v105
    %v190 = vunpack.c.h.b16 %v105
    %v191 = vunpack.c.l.b16 %v106
    %v192 = vunpack.c.h.b16 %v106
    %v193 = vunpack.c.l.b16 %v107
    %v194 = vunpack.c.h.b16 %v107
    %v195 = vunpack.c.l.b16 %v108
    %v196 = vunpack.c.h.b16 %v108
    %v197 = vunpack.c.l.b16 %v109
    %v198 = vunpack.c.h.b16 %v109
    %v199 = vunpack.c.l.b16 %v110
    %v200 = vunpack.c.h.b16 %v110
    %v201 = vunpack.c.l.b16 %v111
    %v202 = vunpack.c.h.b16 %v111
    %v203 = vunpack.c.l.b16 %v112
    %v204 = vunpack.c.h.b16 %v112
    %v205 = vunpack.c.l.b16 %v113
    %v206 = vunpack.c.h.b16 %v113
    %v207 = vunpack.c.l.b16 %v114
    %v208 = vunpack.c.h.b16 %v114
    %v209 = vunpack.c.l.b16 %v115
    %v210 = vunpack.c.h.b16 %v115
    %v211 = vunpack.c.l.b16 %v116
    %v212 = vunpack.c.h.b16 %v116
    %v213 = vpack.c.b16 %v153, %v149
    %v214 = vpack.c.b16 %v154, %v150
    %v215 = vpack.c.b16 %v155, %v151
    %v216 = vpack.c.b16 %v156, %v152
    %v217 = vpack.c.b16 %v161, %v157
    %v218 = vpack.c.b16 %v162, %v158
    %v219 = vpack.c.b16 %v163, %v159
    %v220 = vpack.c.b16 %v164, %v160
    %v221 = vpack.c.b16 %v169, %v165
    %v222 = vpack.c.b16 %v170, %v166
    %v223 = vpack.c.b16 %v171, %v167
    %v224 = vpack.c.b16 %v172, %v168
    %v225 = vpack.c.b16 %v177, %v173
    %v226 = vpack.c.b16 %v178, %v174
    %v227 = vpack.c.b16 %v179, %v175
    %v228 = vpack.c.b16 %v180, %v176
    %v229 = vpack.c.b16 %v185, %v181
    %v230 = vpack.c.b16 %v186, %v182
    %v231 = vpack.c.b16 %v187, %v183
    %v232 = vpack.c.b16 %v188, %v184
    %v233 = vpack.c.b16 %v193, %v189
    %v234 = vpack.c.b16 %v194, %v190
    %v235 = vpack.c.b16 %v195, %v191
    %v236 = vpack.c.b16 %v196, %v192
    %v237 = vpack.c.b16 %v201, %v197
    %v238 = vpack.c.b16 %v202, %v198
    %v239 = vpack.c.b16 %v203, %v199
    %v240 = vpack.c.b16 %v204, %v200
    %v241 = vpack.c.b16 %v209, %v205
    %v242 = vpack.c.b16 %v210, %v206
    %v243 = vpack.c.b16 %v211, %v207
    %v244 = vpack.c.b16 %v212, %v208
    %277 = vmatprep.subr.bf16.mxu0 %v214
    %278 = vmatpush1.bf16.msra.mxu0 %v213
    %279 = vmatprep.subr.bf16.mxu0 %v218
    %280 = vmatpush1.bf16.msra.mxu0 %v217
    %281 = vmatprep.subr.bf16.mxu0 %v222
    %282 = vmatpush1.bf16.msra.mxu0 %v221
    %283 = vmatprep.subr.bf16.mxu0 %v226
    %284 = vmatpush1.bf16.msra.mxu0 %v225
    %285 = vmatprep.subr.bf16.mxu0 %v230
    %286 = vmatpush1.bf16.msra.mxu0 %v229
    %287 = vmatprep.subr.bf16.mxu0 %v234
    %288 = vmatpush1.bf16.msra.mxu0 %v233
    %289 = vmatprep.subr.bf16.mxu0 %v238
    %290 = vmatpush1.bf16.msra.mxu0 %v237
    %291 = vmatprep.subr.bf16.mxu0 %v242
    %292 = vmatpush1.bf16.msra.mxu0 %v241
    %293 = vmatprep.subr.bf16.mxu0 0
    %294 = vmatpush1.bf16.msra.mxu0 0
    %295 = vmatprep.subr.bf16.mxu0 0
    %296 = vmatpush1.bf16.msra.mxu0 0
    %297 = vmatprep.subr.bf16.mxu0 0
    %298 = vmatpush1.bf16.msra.mxu0 0
    %299 = vmatprep.subr.bf16.mxu0 0
    %300 = vmatpush1.bf16.msra.mxu0 0
    %301 = vmatprep.subr.bf16.mxu0 0
    %302 = vmatpush1.bf16.msra.mxu0 0
    %303 = vmatprep.subr.bf16.mxu0 0
    %304 = vmatpush1.bf16.msra.mxu0 0
    %305 = vmatprep.subr.bf16.mxu0 0
    %306 = vmatpush1.bf16.msra.mxu0 0
    %307 = vmatprep.subr.bf16.mxu0 0
    %308 = vmatpush1.bf16.msra.mxu0 0
    %309 = vmatprep.mubr.bf16.mxu0 0
    %310 = vmatmul.mubr.bf16.gmra.mrb[0].mxu0 %v84
    %v311 = vpop.f32.mrb[0].mxu0
    %v312 = vadd.f32 0.0, %v311
    %v313 = vpop.f32.mrb[0].mxu0
    %v314 = vadd.f32 0.0, %v313
    %v315 = vpop.f32.mrb[0].mxu0
    %v316 = vpop.f32.mrb[0].mxu0
    %317 = vdwg.mxu0
    %318 = vmatprep.subr.bf16.mxu0 %v216
    %319 = vmatpush1.bf16.msra.mxu0 %v215
    %320 = vmatprep.subr.bf16.mxu0 %v220
    %321 = vmatpush1.bf16.msra.mxu0 %v219
    %322 = vmatprep.subr.bf16.mxu0 %v224
    %323 = vmatpush1.bf16.msra.mxu0 %v223
    %324 = vmatprep.subr.bf16.mxu0 %v228
    %325 = vmatpush1.bf16.msra.mxu0 %v227
    %326 = vmatprep.subr.bf16.mxu0 %v232
    %327 = vmatpush1.bf16.msra.mxu0 %v231
    %328 = vmatprep.subr.bf16.mxu0 %v236
    %329 = vmatpush1.bf16.msra.mxu0 %v235
    %330 = vmatprep.subr.bf16.mxu0 %v240
    %331 = vmatpush1.bf16.msra.mxu0 %v239
    %332 = vmatprep.subr.bf16.mxu0 %v244
    %333 = vmatpush1.bf16.msra.mxu0 %v243
    %334 = vmatprep.subr.bf16.mxu0 0
    %335 = vmatpush1.bf16.msra.mxu0 0
    %336 = vmatprep.subr.bf16.mxu0 0
    %337 = vmatpush1.bf16.msra.mxu0 0
    %338 = vmatprep.subr.bf16.mxu0 0
    %339 = vmatpush1.bf16.msra.mxu0 0
    %340 = vmatprep.subr.bf16.mxu0 0
    %341 = vmatpush1.bf16.msra.mxu0 0
    %342 = vmatprep.subr.bf16.mxu0 0
    %343 = vmatpush1.bf16.msra.mxu0 0
    %344 = vmatprep.subr.bf16.mxu0 0
    %345 = vmatpush1.bf16.msra.mxu0 0
    %346 = vmatprep.subr.bf16.mxu0 0
    %347 = vmatpush1.bf16.msra.mxu0 0
    %348 = vmatprep.subr.bf16.mxu0 0
    %349 = vmatpush1.bf16.msra.mxu0 0
    %350 = vmatprep.mubr.bf16.mxu0 0
    %351 = vmatmul.mubr.bf16.gmra.mrb[0].mxu0 %v84
    %v352 = vpop.f32.mrb[0].mxu0
    %v353 = vadd.f32 0.0, %v352
    %v354 = vpop.f32.mrb[0].mxu0
    %v355 = vadd.f32 0.0, %v354
    %v356 = vpop.f32.mrb[0].mxu0
    %v357 = vpop.f32.mrb[0].mxu0
    %358 = vdwg.mxu0
    %v359 = vmax.f32 %v312, 0.0
    %v360 = vmax.f32 %v314, 0.0
    %v361 = vmax.f32 %v353, 0.0
    %v362 = vmax.f32 %v355, 0.0
    %v363 = vpack.c.bf16 %v359, %v359
    %v364 = vpack.c.bf16 %v360, %v360
    %v365 = vpack.c.bf16 %v361, %v361
    %v366 = vpack.c.bf16 %v362, %v362
    %v367 = vld [vmem:[#allocation7] sm:$0xff]
    %v368 = vld [vmem:[#allocation7 + $0x8] sm:$0xff]
    %v369 = vld [vmem:[#allocation7 + $0x10] sm:$0xff]
    %v370 = vld [vmem:[#allocation7 + $0x18] sm:$0xff]
    %v371 = vld [vmem:[#allocation7 + $0x20] sm:$0xff]
    %v372 = vld [vmem:[#allocation7 + $0x28] sm:$0xff]
    %v373 = vld [vmem:[#allocation7 + $0x30] sm:$0xff]
    %v374 = vld [vmem:[#allocation7 + $0x38] sm:$0xff]
    %v375 = vld [vmem:[#allocation7 + $0x40] sm:$0xff]
    %v376 = vld [vmem:[#allocation7 + $0x48] sm:$0xff]
    %v377 = vld [vmem:[#allocation7 + $0x50] sm:$0xff]
    %v378 = vld [vmem:[#allocation7 + $0x58] sm:$0xff]
    %v379 = vld [vmem:[#allocation7 + $0x60] sm:$0xff]
    %v380 = vld [vmem:[#allocation7 + $0x68] sm:$0xff]
    %v381 = vld [vmem:[#allocation7 + $0x70] sm:$0xff]
    %v382 = vld [vmem:[#allocation7 + $0x78] sm:$0xff]
    %v383 = vld [vmem:[#allocation7 + $0x80] sm:$0xff]
    %v384 = vld [vmem:[#allocation7 + $0x88] sm:$0xff]
    %v385 = vld [vmem:[#allocation7 + $0x90] sm:$0xff]
    %v386 = vld [vmem:[#allocation7 + $0x98] sm:$0xff]
    %v387 = vld [vmem:[#allocation7 + $0xa0] sm:$0xff]
    %v388 = vld [vmem:[#allocation7 + $0xa8] sm:$0xff]
    %v389 = vld [vmem:[#allocation7 + $0xb0] sm:$0xff]
    %v390 = vld [vmem:[#allocation7 + $0xb8] sm:$0xff]
    %v391 = vld [vmem:[#allocation7 + $0xc0] sm:$0xff]
    %v392 = vld [vmem:[#allocation7 + $0xc8] sm:$0xff]
    %v393 = vld [vmem:[#allocation7 + $0xd0] sm:$0xff]
    %v394 = vld [vmem:[#allocation7 + $0xd8] sm:$0xff]
    %v395 = vld [vmem:[#allocation7 + $0xe0] sm:$0xff]
    %v396 = vld [vmem:[#allocation7 + $0xe8] sm:$0xff]
    %v397 = vld [vmem:[#allocation7 + $0xf0] sm:$0xff]
    %v398 = vld [vmem:[#allocation7 + $0xf8] sm:$0xff]
    %v399 = vld [vmem:[#allocation7 + $0x100] sm:$0xff]
    %v400 = vld [vmem:[#allocation7 + $0x108] sm:$0xff]
    %v401 = vld [vmem:[#allocation7 + $0x110] sm:$0xff]
    %v402 = vld [vmem:[#allocation7 + $0x118] sm:$0xff]
    %v403 = vld [vmem:[#allocation7 + $0x120] sm:$0xff]
    %v404 = vld [vmem:[#allocation7 + $0x128] sm:$0xff]
    %v405 = vld [vmem:[#allocation7 + $0x130] sm:$0xff]
    %v406 = vld [vmem:[#allocation7 + $0x138] sm:$0xff]
    %v407 = vld [vmem:[#allocation7 + $0x140] sm:$0xff]
    %v408 = vld [vmem:[#allocation7 + $0x148] sm:$0xff]
    %v409 = vld [vmem:[#allocation7 + $0x150] sm:$0xff]
    %v410 = vld [vmem:[#allocation7 + $0x158] sm:$0xff]
    %v411 = vld [vmem:[#allocation7 + $0x160] sm:$0xff]
    %v412 = vld [vmem:[#allocation7 + $0x168] sm:$0xff]
    %v413 = vld [vmem:[#allocation7 + $0x170] sm:$0xff]
    %v414 = vld [vmem:[#allocation7 + $0x178] sm:$0xff]
    %v415 = vld [vmem:[#allocation7 + $0x180] sm:$0xff]
    %v416 = vld [vmem:[#allocation7 + $0x188] sm:$0xff]
    %v417 = vld [vmem:[#allocation7 + $0x190] sm:$0xff]
    %v418 = vld [vmem:[#allocation7 + $0x198] sm:$0xff]
    %v419 = vld [vmem:[#allocation7 + $0x1a0] sm:$0xff]
    %v420 = vld [vmem:[#allocation7 + $0x1a8] sm:$0xff]
    %v421 = vld [vmem:[#allocation7 + $0x1b0] sm:$0xff]
    %v422 = vld [vmem:[#allocation7 + $0x1b8] sm:$0xff]
    %v423 = vld [vmem:[#allocation7 + $0x1c0] sm:$0xff]
    %v424 = vld [vmem:[#allocation7 + $0x1c8] sm:$0xff]
    %v425 = vld [vmem:[#allocation7 + $0x1d0] sm:$0xff]
    %v426 = vld [vmem:[#allocation7 + $0x1d8] sm:$0xff]
    %v427 = vld [vmem:[#allocation7 + $0x1e0] sm:$0xff]
    %v428 = vld [vmem:[#allocation7 + $0x1e8] sm:$0xff]
    %v429 = vld [vmem:[#allocation7 + $0x1f0] sm:$0xff]
    %v430 = vld [vmem:[#allocation7 + $0x1f8] sm:$0xff]
    %v431 = vld [vmem:[#allocation7 + $0x200] sm:$0xff]
    %v432 = vld [vmem:[#allocation7 + $0x208] sm:$0xff]
    %v433 = vld [vmem:[#allocation7 + $0x210] sm:$0xff]
    %v434 = vld [vmem:[#allocation7 + $0x218] sm:$0xff]
    %v435 = vld [vmem:[#allocation7 + $0x220] sm:$0xff]
    %v436 = vld [vmem:[#allocation7 + $0x228] sm:$0xff]
    %v437 = vld [vmem:[#allocation7 + $0x230] sm:$0xff]
    %v438 = vld [vmem:[#allocation7 + $0x238] sm:$0xff]
    %v439 = vld [vmem:[#allocation7 + $0x240] sm:$0xff]
    %v440 = vld [vmem:[#allocation7 + $0x248] sm:$0xff]
    %v441 = vld [vmem:[#allocation7 + $0x250] sm:$0xff]
    %v442 = vld [vmem:[#allocation7 + $0x258] sm:$0xff]
    %v443 = vld [vmem:[#allocation7 + $0x260] sm:$0xff]
    %v444 = vld [vmem:[#allocation7 + $0x268] sm:$0xff]
    %v445 = vld [vmem:[#allocation7 + $0x270] sm:$0xff]
    %v446 = vld [vmem:[#allocation7 + $0x278] sm:$0xff]
    %v447 = vld [vmem:[#allocation7 + $0x280] sm:$0xff]
    %v448 = vld [vmem:[#allocation7 + $0x288] sm:$0xff]
    %v449 = vld [vmem:[#allocation7 + $0x290] sm:$0xff]
    %v450 = vld [vmem:[#allocation7 + $0x298] sm:$0xff]
    %v451 = vld [vmem:[#allocation7 + $0x2a0] sm:$0xff]
    %v452 = vld [vmem:[#allocation7 + $0x2a8] sm:$0xff]
    %v453 = vld [vmem:[#allocation7 + $0x2b0] sm:$0xff]
    %v454 = vld [vmem:[#allocation7 + $0x2b8] sm:$0xff]
    %v455 = vld [vmem:[#allocation7 + $0x2c0] sm:$0xff]
    %v456 = vld [vmem:[#allocation7 + $0x2c8] sm:$0xff]
    %v457 = vld [vmem:[#allocation7 + $0x2d0] sm:$0xff]
    %v458 = vld [vmem:[#allocation7 + $0x2d8] sm:$0xff]
    %v459 = vld [vmem:[#allocation7 + $0x2e0] sm:$0xff]
    %v460 = vld [vmem:[#allocation7 + $0x2e8] sm:$0xff]
    %v461 = vld [vmem:[#allocation7 + $0x2f0] sm:$0xff]
    %v462 = vld [vmem:[#allocation7 + $0x2f8] sm:$0xff]
    %v463 = vld [vmem:[#allocation7 + $0x300] sm:$0xff]
    %v464 = vld [vmem:[#allocation7 + $0x308] sm:$0xff]
    %v465 = vld [vmem:[#allocation7 + $0x310] sm:$0xff]
    %v466 = vld [vmem:[#allocation7 + $0x318] sm:$0xff]
    %v467 = vld [vmem:[#allocation7 + $0x320] sm:$0xff]
    %v468 = vld [vmem:[#allocation7 + $0x328] sm:$0xff]
    %v469 = vld [vmem:[#allocation7 + $0x330] sm:$0xff]
    %v470 = vld [vmem:[#allocation7 + $0x338] sm:$0xff]
    %v471 = vld [vmem:[#allocation7 + $0x340] sm:$0xff]
    %v472 = vld [vmem:[#allocation7 + $0x348] sm:$0xff]
    %v473 = vld [vmem:[#allocation7 + $0x350] sm:$0xff]
    %v474 = vld [vmem:[#allocation7 + $0x358] sm:$0xff]
    %v475 = vld [vmem:[#allocation7 + $0x360] sm:$0xff]
    %v476 = vld [vmem:[#allocation7 + $0x368] sm:$0xff]
    %v477 = vld [vmem:[#allocation7 + $0x370] sm:$0xff]
    %v478 = vld [vmem:[#allocation7 + $0x378] sm:$0xff]
    %v479 = vld [vmem:[#allocation7 + $0x380] sm:$0xff]
    %v480 = vld [vmem:[#allocation7 + $0x388] sm:$0xff]
    %v481 = vld [vmem:[#allocation7 + $0x390] sm:$0xff]
    %v482 = vld [vmem:[#allocation7 + $0x398] sm:$0xff]
    %v483 = vld [vmem:[#allocation7 + $0x3a0] sm:$0xff]
    %v484 = vld [vmem:[#allocation7 + $0x3a8] sm:$0xff]
    %v485 = vld [vmem:[#allocation7 + $0x3b0] sm:$0xff]
    %v486 = vld [vmem:[#allocation7 + $0x3b8] sm:$0xff]
    %v487 = vld [vmem:[#allocation7 + $0x3c0] sm:$0xff]
    %v488 = vld [vmem:[#allocation7 + $0x3c8] sm:$0xff]
    %v489 = vld [vmem:[#allocation7 + $0x3d0] sm:$0xff]
    %v490 = vld [vmem:[#allocation7 + $0x3d8] sm:$0xff]
    %v491 = vld [vmem:[#allocation7 + $0x3e0] sm:$0xff]
    %v492 = vld [vmem:[#allocation7 + $0x3e8] sm:$0xff]
    %v493 = vld [vmem:[#allocation7 + $0x3f0] sm:$0xff]
    %v494 = vld [vmem:[#allocation7 + $0x3f8] sm:$0xff]
    %v495 = vld [vmem:[%s3] sm:$0xf]
    %v497 = vlaneseq
    %v498 = vshrl.u32 %v497, 7
    %v499 = vsub.s32 0, %v498
    %v500 = vrot.slane %v495, %v499
    %v501 = vlaneseq
    %v502 = vshrl.u32 %v501, 7
    %v503 = vsub.s32 1, %v502
    %v504 = vrot.slane %v495, %v503
    %v505 = vlaneseq
    %v506 = vshrl.u32 %v505, 7
    %v507 = vsub.s32 2, %v506
    %v508 = vrot.slane %v495, %v507
    %v509 = vlaneseq
    %v510 = vshrl.u32 %v509, 7
    %v511 = vsub.s32 3, %v510
    %v512 = vrot.slane %v495, %v511
    %v645 = vunpack.c.l.b16 %v367
    %v646 = vunpack.c.h.b16 %v367
    %v647 = vunpack.c.l.b16 %v368
    %v648 = vunpack.c.h.b16 %v368
    %v649 = vunpack.c.l.b16 %v369
    %v650 = vunpack.c.h.b16 %v369
    %v651 = vunpack.c.l.b16 %v370
    %v652 = vunpack.c.h.b16 %v370
    %v653 = vunpack.c.l.b16 %v371
    %v654 = vunpack.c.h.b16 %v371
    %v655 = vunpack.c.l.b16 %v372
    %v656 = vunpack.c.h.b16 %v372
    %v657 = vunpack.c.l.b16 %v373
    %v658 = vunpack.c.h.b16 %v373
    %v659 = vunpack.c.l.b16 %v374
    %v660 = vunpack.c.h.b16 %v374
    %v661 = vunpack.c.l.b16 %v375
    %v662 = vunpack.c.h.b16 %v375
    %v663 = vunpack.c.l.b16 %v376
    %v664 = vunpack.c.h.b16 %v376
    %v665 = vunpack.c.l.b16 %v377
    %v666 = vunpack.c.h.b16 %v377
    %v667 = vunpack.c.l.b16 %v378
    %v668 = vunpack.c.h.b16 %v378
    %v669 = vunpack.c.l.b16 %v379
    %v670 = vunpack.c.h.b16 %v379
    %v671 = vunpack.c.l.b16 %v380
    %v672 = vunpack.c.h.b16 %v380
    %v673 = vunpack.c.l.b16 %v381
    %v674 = vunpack.c.h.b16 %v381
    %v675 = vunpack.c.l.b16 %v382
    %v676 = vunpack.c.h.b16 %v382
    %v677 = vunpack.c.l.b16 %v383
    %v678 = vunpack.c.h.b16 %v383
    %v679 = vunpack.c.l.b16 %v384
    %v680 = vunpack.c.h.b16 %v384
    %v681 = vunpack.c.l.b16 %v385
    %v682 = vunpack.c.h.b16 %v385
    %v683 = vunpack.c.l.b16 %v386
    %v684 = vunpack.c.h.b16 %v386
    %v685 = vunpack.c.l.b16 %v387
    %v686 = vunpack.c.h.b16 %v387
    %v687 = vunpack.c.l.b16 %v388
    %v688 = vunpack.c.h.b16 %v388
    %v689 = vunpack.c.l.b16 %v389
    %v690 = vunpack.c.h.b16 %v389
    %v691 = vunpack.c.l.b16 %v390
    %v692 = vunpack.c.h.b16 %v390
    %v693 = vunpack.c.l.b16 %v391
    %v694 = vunpack.c.h.b16 %v391
    %v695 = vunpack.c.l.b16 %v392
    %v696 = vunpack.c.h.b16 %v392
    %v697 = vunpack.c.l.b16 %v393
    %v698 = vunpack.c.h.b16 %v393
    %v699 = vunpack.c.l.b16 %v394
    %v700 = vunpack.c.h.b16 %v394
    %v701 = vunpack.c.l.b16 %v395
    %v702 = vunpack.c.h.b16 %v395
    %v703 = vunpack.c.l.b16 %v396
    %v704 = vunpack.c.h.b16 %v396
    %v705 = vunpack.c.l.b16 %v397
    %v706 = vunpack.c.h.b16 %v397
    %v707 = vunpack.c.l.b16 %v398
    %v708 = vunpack.c.h.b16 %v398
    %v709 = vunpack.c.l.b16 %v399
    %v710 = vunpack.c.h.b16 %v399
    %v711 = vunpack.c.l.b16 %v400
    %v712 = vunpack.c.h.b16 %v400
    %v713 = vunpack.c.l.b16 %v401
    %v714 = vunpack.c.h.b16 %v401
    %v715 = vunpack.c.l.b16 %v402
    %v716 = vunpack.c.h.b16 %v402
    %v717 = vunpack.c.l.b16 %v403
    %v718 = vunpack.c.h.b16 %v403
    %v719 = vunpack.c.l.b16 %v404
    %v720 = vunpack.c.h.b16 %v404
    %v721 = vunpack.c.l.b16 %v405
    %v722 = vunpack.c.h.b16 %v405
    %v723 = vunpack.c.l.b16 %v406
    %v724 = vunpack.c.h.b16 %v406
    %v725 = vunpack.c.l.b16 %v407
    %v726 = vunpack.c.h.b16 %v407
    %v727 = vunpack.c.l.b16 %v408
    %v728 = vunpack.c.h.b16 %v408
    %v729 = vunpack.c.l.b16 %v409
    %v730 = vunpack.c.h.b16 %v409
    %v731 = vunpack.c.l.b16 %v410
    %v732 = vunpack.c.h.b16 %v410
    %v733 = vunpack.c.l.b16 %v411
    %v734 = vunpack.c.h.b16 %v411
    %v735 = vunpack.c.l.b16 %v412
    %v736 = vunpack.c.h.b16 %v412
    %v737 = vunpack.c.l.b16 %v413
    %v738 = vunpack.c.h.b16 %v413
    %v739 = vunpack.c.l.b16 %v414
    %v740 = vunpack.c.h.b16 %v414
    %v741 = vunpack.c.l.b16 %v415
    %v742 = vunpack.c.h.b16 %v415
    %v743 = vunpack.c.l.b16 %v416
    %v744 = vunpack.c.h.b16 %v416
    %v745 = vunpack.c.l.b16 %v417
    %v746 = vunpack.c.h.b16 %v417
    %v747 = vunpack.c.l.b16 %v418
    %v748 = vunpack.c.h.b16 %v418
    %v749 = vunpack.c.l.b16 %v419
    %v750 = vunpack.c.h.b16 %v419
    %v751 = vunpack.c.l.b16 %v420
    %v752 = vunpack.c.h.b16 %v420
    %v753 = vunpack.c.l.b16 %v421
    %v754 = vunpack.c.h.b16 %v421
    %v755 = vunpack.c.l.b16 %v422
    %v756 = vunpack.c.h.b16 %v422
    %v757 = vunpack.c.l.b16 %v423
    %v758 = vunpack.c.h.b16 %v423
    %v759 = vunpack.c.l.b16 %v424
    %v760 = vunpack.c.h.b16 %v424
    %v761 = vunpack.c.l.b16 %v425
    %v762 = vunpack.c.h.b16 %v425
    %v763 = vunpack.c.l.b16 %v426
    %v764 = vunpack.c.h.b16 %v426
    %v765 = vunpack.c.l.b16 %v427
    %v766 = vunpack.c.h.b16 %v427
    %v767 = vunpack.c.l.b16 %v428
    %v768 = vunpack.c.h.b16 %v428
    %v769 = vunpack.c.l.b16 %v429
    %v770 = vunpack.c.h.b16 %v429
    %v771 = vunpack.c.l.b16 %v430
    %v772 = vunpack.c.h.b16 %v430
    %v773 = vunpack.c.l.b16 %v431
    %v774 = vunpack.c.h.b16 %v431
    %v775 = vunpack.c.l.b16 %v432
    %v776 = vunpack.c.h.b16 %v432
    %v777 = vunpack.c.l.b16 %v433
    %v778 = vunpack.c.h.b16 %v433
    %v779 = vunpack.c.l.b16 %v434
    %v780 = vunpack.c.h.b16 %v434
    %v781 = vunpack.c.l.b16 %v435
    %v782 = vunpack.c.h.b16 %v435
    %v783 = vunpack.c.l.b16 %v436
    %v784 = vunpack.c.h.b16 %v436
    %v785 = vunpack.c.l.b16 %v437
    %v786 = vunpack.c.h.b16 %v437
    %v787 = vunpack.c.l.b16 %v438
    %v788 = vunpack.c.h.b16 %v438
    %v789 = vunpack.c.l.b16 %v439
    %v790 = vunpack.c.h.b16 %v439
    %v791 = vunpack.c.l.b16 %v440
    %v792 = vunpack.c.h.b16 %v440
    %v793 = vunpack.c.l.b16 %v441
    %v794 = vunpack.c.h.b16 %v441
    %v795 = vunpack.c.l.b16 %v442
    %v796 = vunpack.c.h.b16 %v442
    %v797 = vunpack.c.l.b16 %v443
    %v798 = vunpack.c.h.b16 %v443
    %v799 = vunpack.c.l.b16 %v444
    %v800 = vunpack.c.h.b16 %v444
    %v801 = vunpack.c.l.b16 %v445
    %v802 = vunpack.c.h.b16 %v445
    %v803 = vunpack.c.l.b16 %v446
    %v804 = vunpack.c.h.b16 %v446
    %v805 = vunpack.c.l.b16 %v447
    %v806 = vunpack.c.h.b16 %v447
    %v807 = vunpack.c.l.b16 %v448
    %v808 = vunpack.c.h.b16 %v448
    %v809 = vunpack.c.l.b16 %v449
    %v810 = vunpack.c.h.b16 %v449
    %v811 = vunpack.c.l.b16 %v450
    %v812 = vunpack.c.h.b16 %v450
    %v813 = vunpack.c.l.b16 %v451
    %v814 = vunpack.c.h.b16 %v451
    %v815 = vunpack.c.l.b16 %v452
    %v816 = vunpack.c.h.b16 %v452
    %v817 = vunpack.c.l.b16 %v453
    %v818 = vunpack.c.h.b16 %v453
    %v819 = vunpack.c.l.b16 %v454
    %v820 = vunpack.c.h.b16 %v454
    %v821 = vunpack.c.l.b16 %v455
    %v822 = vunpack.c.h.b16 %v455
    %v823 = vunpack.c.l.b16 %v456
    %v824 = vunpack.c.h.b16 %v456
    %v825 = vunpack.c.l.b16 %v457
    %v826 = vunpack.c.h.b16 %v457
    %v827 = vunpack.c.l.b16 %v458
    %v828 = vunpack.c.h.b16 %v458
    %v829 = vunpack.c.l.b16 %v459
    %v830 = vunpack.c.h.b16 %v459
    %v831 = vunpack.c.l.b16 %v460
    %v832 = vunpack.c.h.b16 %v460
    %v833 = vunpack.c.l.b16 %v461
    %v834 = vunpack.c.h.b16 %v461
    %v835 = vunpack.c.l.b16 %v462
    %v836 = vunpack.c.h.b16 %v462
    %v837 = vunpack.c.l.b16 %v463
    %v838 = vunpack.c.h.b16 %v463
    %v839 = vunpack.c.l.b16 %v464
    %v840 = vunpack.c.h.b16 %v464
    %v841 = vunpack.c.l.b16 %v465
    %v842 = vunpack.c.h.b16 %v465
    %v843 = vunpack.c.l.b16 %v466
    %v844 = vunpack.c.h.b16 %v466
    %v845 = vunpack.c.l.b16 %v467
    %v846 = vunpack.c.h.b16 %v467
    %v847 = vunpack.c.l.b16 %v468
    %v848 = vunpack.c.h.b16 %v468
    %v849 = vunpack.c.l.b16 %v469
    %v850 = vunpack.c.h.b16 %v469
    %v851 = vunpack.c.l.b16 %v470
    %v852 = vunpack.c.h.b16 %v470
    %v853 = vunpack.c.l.b16 %v471
    %v854 = vunpack.c.h.b16 %v471
    %v855 = vunpack.c.l.b16 %v472
    %v856 = vunpack.c.h.b16 %v472
    %v857 = vunpack.c.l.b16 %v473
    %v858 = vunpack.c.h.b16 %v473
    %v859 = vunpack.c.l.b16 %v474
    %v860 = vunpack.c.h.b16 %v474
    %v861 = vunpack.c.l.b16 %v475
    %v862 = vunpack.c.h.b16 %v475
    %v863 = vunpack.c.l.b16 %v476
    %v864 = vunpack.c.h.b16 %v476
    %v865 = vunpack.c.l.b16 %v477
    %v866 = vunpack.c.h.b16 %v477
    %v867 = vunpack.c.l.b16 %v478
    %v868 = vunpack.c.h.b16 %v478
    %v869 = vunpack.c.l.b16 %v479
    %v870 = vunpack.c.h.b16 %v479
    %v871 = vunpack.c.l.b16 %v480
    %v872 = vunpack.c.h.b16 %v480
    %v873 = vunpack.c.l.b16 %v481
    %v874 = vunpack.c.h.b16 %v481
    %v875 = vunpack.c.l.b16 %v482
    %v876 = vunpack.c.h.b16 %v482
    %v877 = vunpack.c.l.b16 %v483
    %v878 = vunpack.c.h.b16 %v483
    %v879 = vunpack.c.l.b16 %v484
    %v880 = vunpack.c.h.b16 %v484
    %v881 = vunpack.c.l.b16 %v485
    %v882 = vunpack.c.h.b16 %v485
    %v883 = vunpack.c.l.b16 %v486
    %v884 = vunpack.c.h.b16 %v486
    %v885 = vunpack.c.l.b16 %v487
    %v886 = vunpack.c.h.b16 %v487
    %v887 = vunpack.c.l.b16 %v488
    %v888 = vunpack.c.h.b16 %v488
    %v889 = vunpack.c.l.b16 %v489
    %v890 = vunpack.c.h.b16 %v489
    %v891 = vunpack.c.l.b16 %v490
    %v892 = vunpack.c.h.b16 %v490
    %v893 = vunpack.c.l.b16 %v491
    %v894 = vunpack.c.h.b16 %v491
    %v895 = vunpack.c.l.b16 %v492
    %v896 = vunpack.c.h.b16 %v492
    %v897 = vunpack.c.l.b16 %v493
    %v898 = vunpack.c.h.b16 %v493
    %v899 = vunpack.c.l.b16 %v494
    %v900 = vunpack.c.h.b16 %v494
    %v901 = vpack.c.b16 %v649, %v645
    %v902 = vpack.c.b16 %v650, %v646
    %v903 = vpack.c.b16 %v651, %v647
    %v904 = vpack.c.b16 %v652, %v648
    %v905 = vpack.c.b16 %v657, %v653
    %v906 = vpack.c.b16 %v658, %v654
    %v907 = vpack.c.b16 %v659, %v655
    %v908 = vpack.c.b16 %v660, %v656
    %v909 = vpack.c.b16 %v665, %v661
    %v910 = vpack.c.b16 %v666, %v662
    %v911 = vpack.c.b16 %v667, %v663
    %v912 = vpack.c.b16 %v668, %v664
    %v913 = vpack.c.b16 %v673, %v669
    %v914 = vpack.c.b16 %v674, %v670
    %v915 = vpack.c.b16 %v675, %v671
    %v916 = vpack.c.b16 %v676, %v672
    %v917 = vpack.c.b16 %v681, %v677
    %v918 = vpack.c.b16 %v682, %v678
    %v919 = vpack.c.b16 %v683, %v679
    %v920 = vpack.c.b16 %v684, %v680
    %v921 = vpack.c.b16 %v689, %v685
    %v922 = vpack.c.b16 %v690, %v686
    %v923 = vpack.c.b16 %v691, %v687
    %v924 = vpack.c.b16 %v692, %v688
    %v925 = vpack.c.b16 %v697, %v693
    %v926 = vpack.c.b16 %v698, %v694
    %v927 = vpack.c.b16 %v699, %v695
    %v928 = vpack.c.b16 %v700, %v696
    %v929 = vpack.c.b16 %v705, %v701
    %v930 = vpack.c.b16 %v706, %v702
    %v931 = vpack.c.b16 %v707, %v703
    %v932 = vpack.c.b16 %v708, %v704
    %v933 = vpack.c.b16 %v713, %v709
    %v934 = vpack.c.b16 %v714, %v710
    %v935 = vpack.c.b16 %v715, %v711
    %v936 = vpack.c.b16 %v716, %v712
    %v937 = vpack.c.b16 %v721, %v717
    %v938 = vpack.c.b16 %v722, %v718
    %v939 = vpack.c.b16 %v723, %v719
    %v940 = vpack.c.b16 %v724, %v720
    %v941 = vpack.c.b16 %v729, %v725
    %v942 = vpack.c.b16 %v730, %v726
    %v943 = vpack.c.b16 %v731, %v727
    %v944 = vpack.c.b16 %v732, %v728
    %v945 = vpack.c.b16 %v737, %v733
    %v946 = vpack.c.b16 %v738, %v734
    %v947 = vpack.c.b16 %v739, %v735
    %v948 = vpack.c.b16 %v740, %v736
    %v949 = vpack.c.b16 %v745, %v741
    %v950 = vpack.c.b16 %v746, %v742
    %v951 = vpack.c.b16 %v747, %v743
    %v952 = vpack.c.b16 %v748, %v744
    %v953 = vpack.c.b16 %v753, %v749
    %v954 = vpack.c.b16 %v754, %v750
    %v955 = vpack.c.b16 %v755, %v751
    %v956 = vpack.c.b16 %v756, %v752
    %v957 = vpack.c.b16 %v761, %v757
    %v958 = vpack.c.b16 %v762, %v758
    %v959 = vpack.c.b16 %v763, %v759
    %v960 = vpack.c.b16 %v764, %v760
    %v961 = vpack.c.b16 %v769, %v765
    %v962 = vpack.c.b16 %v770, %v766
    %v963 = vpack.c.b16 %v771, %v767
    %v964 = vpack.c.b16 %v772, %v768
    %v965 = vpack.c.b16 %v777, %v773
    %v966 = vpack.c.b16 %v778, %v774
    %v967 = vpack.c.b16 %v779, %v775
    %v968 = vpack.c.b16 %v780, %v776
    %v969 = vpack.c.b16 %v785, %v781
    %v970 = vpack.c.b16 %v786, %v782
    %v971 = vpack.c.b16 %v787, %v783
    %v972 = vpack.c.b16 %v788, %v784
    %v973 = vpack.c.b16 %v793, %v789
    %v974 = vpack.c.b16 %v794, %v790
    %v975 = vpack.c.b16 %v795, %v791
    %v976 = vpack.c.b16 %v796, %v792
    %v977 = vpack.c.b16 %v801, %v797
    %v978 = vpack.c.b16 %v802, %v798
    %v979 = vpack.c.b16 %v803, %v799
    %v980 = vpack.c.b16 %v804, %v800
    %v981 = vpack.c.b16 %v809, %v805
    %v982 = vpack.c.b16 %v810, %v806
    %v983 = vpack.c.b16 %v811, %v807
    %v984 = vpack.c.b16 %v812, %v808
    %v985 = vpack.c.b16 %v817, %v813
    %v986 = vpack.c.b16 %v818, %v814
    %v987 = vpack.c.b16 %v819, %v815
    %v988 = vpack.c.b16 %v820, %v816
    %v989 = vpack.c.b16 %v825, %v821
    %v990 = vpack.c.b16 %v826, %v822
    %v991 = vpack.c.b16 %v827, %v823
    %v992 = vpack.c.b16 %v828, %v824
    %v993 = vpack.c.b16 %v833, %v829
    %v994 = vpack.c.b16 %v834, %v830
    %v995 = vpack.c.b16 %v835, %v831
    %v996 = vpack.c.b16 %v836, %v832
    %v997 = vpack.c.b16 %v841, %v837
    %v998 = vpack.c.b16 %v842, %v838
    %v999 = vpack.c.b16 %v843, %v839
    %v1000 = vpack.c.b16 %v844, %v840
    %v1001 = vpack.c.b16 %v849, %v845
    %v1002 = vpack.c.b16 %v850, %v846
    %v1003 = vpack.c.b16 %v851, %v847
    %v1004 = vpack.c.b16 %v852, %v848
    %v1005 = vpack.c.b16 %v857, %v853
    %v1006 = vpack.c.b16 %v858, %v854
    %v1007 = vpack.c.b16 %v859, %v855
    %v1008 = vpack.c.b16 %v860, %v856
    %v1009 = vpack.c.b16 %v865, %v861
    %v1010 = vpack.c.b16 %v866, %v862
    %v1011 = vpack.c.b16 %v867, %v863
    %v1012 = vpack.c.b16 %v868, %v864
    %v1013 = vpack.c.b16 %v873, %v869
    %v1014 = vpack.c.b16 %v874, %v870
    %v1015 = vpack.c.b16 %v875, %v871
    %v1016 = vpack.c.b16 %v876, %v872
    %v1017 = vpack.c.b16 %v881, %v877
    %v1018 = vpack.c.b16 %v882, %v878
    %v1019 = vpack.c.b16 %v883, %v879
    %v1020 = vpack.c.b16 %v884, %v880
    %v1021 = vpack.c.b16 %v889, %v885
    %v1022 = vpack.c.b16 %v890, %v886
    %v1023 = vpack.c.b16 %v891, %v887
    %v1024 = vpack.c.b16 %v892, %v888
    %v1025 = vpack.c.b16 %v897, %v893
    %v1026 = vpack.c.b16 %v898, %v894
    %v1027 = vpack.c.b16 %v899, %v895
    %v1028 = vpack.c.b16 %v900, %v896
    %1157 = vmatprep.subr.bf16.mxu0 %v902
    %1158 = vmatpush1.bf16.msra.mxu0 %v901
    %1159 = vmatprep.subr.bf16.mxu0 %v906
    %1160 = vmatpush1.bf16.msra.mxu0 %v905
    %1161 = vmatprep.subr.bf16.mxu0 %v910
    %1162 = vmatpush1.bf16.msra.mxu0 %v909
    %1163 = vmatprep.subr.bf16.mxu0 %v914
    %1164 = vmatpush1.bf16.msra.mxu0 %v913
    %1165 = vmatprep.subr.bf16.mxu0 %v918
    %1166 = vmatpush1.bf16.msra.mxu0 %v917
    %1167 = vmatprep.subr.bf16.mxu0 %v922
    %1168 = vmatpush1.bf16.msra.mxu0 %v921
    %1169 = vmatprep.subr.bf16.mxu0 %v926
    %1170 = vmatpush1.bf16.msra.mxu0 %v925
    %1171 = vmatprep.subr.bf16.mxu0 %v930
    %1172 = vmatpush1.bf16.msra.mxu0 %v929
    %1173 = vmatprep.subr.bf16.mxu0 %v934
    %1174 = vmatpush1.bf16.msra.mxu0 %v933
    %1175 = vmatprep.subr.bf16.mxu0 %v938
    %1176 = vmatpush1.bf16.msra.mxu0 %v937
    %1177 = vmatprep.subr.bf16.mxu0 %v942
    %1178 = vmatpush1.bf16.msra.mxu0 %v941
    %1179 = vmatprep.subr.bf16.mxu0 %v946
    %1180 = vmatpush1.bf16.msra.mxu0 %v945
    %1181 = vmatprep.subr.bf16.mxu0 %v950
    %1182 = vmatpush1.bf16.msra.mxu0 %v949
    %1183 = vmatprep.subr.bf16.mxu0 %v954
    %1184 = vmatpush1.bf16.msra.mxu0 %v953
    %1185 = vmatprep.subr.bf16.mxu0 %v958
    %1186 = vmatpush1.bf16.msra.mxu0 %v957
    %1187 = vmatprep.subr.bf16.mxu0 %v962
    %1188 = vmatpush1.bf16.msra.mxu0 %v961
    %1189 = vmatprep.mubr.bf16.mxu0 %v364
    %1190 = vmatmul.mubr.bf16.gmra.mrb[0].mxu0 %v363
    %v1191 = vpop.f32.mrb[0].mxu0
    %v1192 = vadd.f32 %v500, %v1191
    %v1193 = vpop.f32.mrb[0].mxu0
    %v1194 = vadd.f32 %v504, %v1193
    %v1195 = vpop.f32.mrb[0].mxu0
    %v1196 = vpop.f32.mrb[0].mxu0
    %1197 = vdwg.mxu0
    %1198 = vmatprep.subr.bf16.mxu0 %v966
    %1199 = vmatpush1.bf16.msra.mxu0 %v965
    %1200 = vmatprep.subr.bf16.mxu0 %v970
    %1201 = vmatpush1.bf16.msra.mxu0 %v969
    %1202 = vmatprep.subr.bf16.mxu0 %v974
    %1203 = vmatpush1.bf16.msra.mxu0 %v973
    %1204 = vmatprep.subr.bf16.mxu0 %v978
    %1205 = vmatpush1.bf16.msra.mxu0 %v977
    %1206 = vmatprep.subr.bf16.mxu0 %v982
    %1207 = vmatpush1.bf16.msra.mxu0 %v981
    %1208 = vmatprep.subr.bf16.mxu0 %v986
    %1209 = vmatpush1.bf16.msra.mxu0 %v985
    %1210 = vmatprep.subr.bf16.mxu0 %v990
    %1211 = vmatpush1.bf16.msra.mxu0 %v989
    %1212 = vmatprep.subr.bf16.mxu0 %v994
    %1213 = vmatpush1.bf16.msra.mxu0 %v993
    %1214 = vmatprep.subr.bf16.mxu0 %v998
    %1215 = vmatpush1.bf16.msra.mxu0 %v997
    %1216 = vmatprep.subr.bf16.mxu0 %v1002
    %1217 = vmatpush1.bf16.msra.mxu0 %v1001
    %1218 = vmatprep.subr.bf16.mxu0 %v1006
    %1219 = vmatpush1.bf16.msra.mxu0 %v1005
    %1220 = vmatprep.subr.bf16.mxu0 %v1010
    %1221 = vmatpush1.bf16.msra.mxu0 %v1009
    %1222 = vmatprep.subr.bf16.mxu0 %v1014
    %1223 = vmatpush1.bf16.msra.mxu0 %v1013
    %1224 = vmatprep.subr.bf16.mxu0 %v1018
    %1225 = vmatpush1.bf16.msra.mxu0 %v1017
    %1226 = vmatprep.subr.bf16.mxu0 %v1022
    %1227 = vmatpush1.bf16.msra.mxu0 %v1021
    %1228 = vmatprep.subr.bf16.mxu0 %v1026
    %1229 = vmatpush1.bf16.msra.mxu0 %v1025
    %1230 = vmatprep.mubr.bf16.mxu0 %v366
    %1231 = vmatmul.mubr.bf16.gmra.mrb[0].mxu0 %v365
    %v1232 = vpop.f32.mrb[0].mxu0
    %v1233 = vadd.f32 %v1192, %v1232
    %v1234 = vpop.f32.mrb[0].mxu0
    %v1235 = vadd.f32 %v1194, %v1234
    %v1236 = vpop.f32.mrb[0].mxu0
    %v1237 = vpop.f32.mrb[0].mxu0
    %1238 = vdwg.mxu0
    %1239 = vmatprep.subr.bf16.mxu0 %v904
    %1240 = vmatpush1.bf16.msra.mxu0 %v903
    %1241 = vmatprep.subr.bf16.mxu0 %v908
    %1242 = vmatpush1.bf16.msra.mxu0 %v907
    %1243 = vmatprep.subr.bf16.mxu0 %v912
    %1244 = vmatpush1.bf16.msra.mxu0 %v911
    %1245 = vmatprep.subr.bf16.mxu0 %v916
    %1246 = vmatpush1.bf16.msra.mxu0 %v915
    %1247 = vmatprep.subr.bf16.mxu0 %v920
    %1248 = vmatpush1.bf16.msra.mxu0 %v919
    %1249 = vmatprep.subr.bf16.mxu0 %v924
    %1250 = vmatpush1.bf16.msra.mxu0 %v923
    %1251 = vmatprep.subr.bf16.mxu0 %v928
    %1252 = vmatpush1.bf16.msra.mxu0 %v927
    %1253 = vmatprep.subr.bf16.mxu0 %v932
    %1254 = vmatpush1.bf16.msra.mxu0 %v931
    %1255 = vmatprep.subr.bf16.mxu0 %v936
    %1256 = vmatpush1.bf16.msra.mxu0 %v935
    %1257 = vmatprep.subr.bf16.mxu0 %v940
    %1258 = vmatpush1.bf16.msra.mxu0 %v939
    %1259 = vmatprep.subr.bf16.mxu0 %v944
    %1260 = vmatpush1.bf16.msra.mxu0 %v943
    %1261 = vmatprep.subr.bf16.mxu0 %v948
    %1262 = vmatpush1.bf16.msra.mxu0 %v947
    %1263 = vmatprep.subr.bf16.mxu0 %v952
    %1264 = vmatpush1.bf16.msra.mxu0 %v951
    %1265 = vmatprep.subr.bf16.mxu0 %v956
    %1266 = vmatpush1.bf16.msra.mxu0 %v955
    %1267 = vmatprep.subr.bf16.mxu0 %v960
    %1268 = vmatpush1.bf16.msra.mxu0 %v959
    %1269 = vmatprep.subr.bf16.mxu0 %v964
    %1270 = vmatpush1.bf16.msra.mxu0 %v963
    %1271 = vmatprep.mubr.bf16.mxu0 %v364
    %1272 = vmatmul.mubr.bf16.gmra.mrb[0].mxu0 %v363
    %v1273 = vpop.f32.mrb[0].mxu0
    %v1274 = vadd.f32 %v508, %v1273
    %v1275 = vpop.f32.mrb[0].mxu0
    %v1276 = vadd.f32 %v512, %v1275
    %v1277 = vpop.f32.mrb[0].mxu0
    %v1278 = vpop.f32.mrb[0].mxu0
    %1279 = vdwg.mxu0
    %1280 = vmatprep.subr.bf16.mxu0 %v968
    %1281 = vmatpush1.bf16.msra.mxu0 %v967
    %1282 = vmatprep.subr.bf16.mxu0 %v972
    %1283 = vmatpush1.bf16.msra.mxu0 %v971
    %1284 = vmatprep.subr.bf16.mxu0 %v976
    %1285 = vmatpush1.bf16.msra.mxu0 %v975
    %1286 = vmatprep.subr.bf16.mxu0 %v980
    %1287 = vmatpush1.bf16.msra.mxu0 %v979
    %1288 = vmatprep.subr.bf16.mxu0 %v984
    %1289 = vmatpush1.bf16.msra.mxu0 %v983
    %1290 = vmatprep.subr.bf16.mxu0 %v988
    %1291 = vmatpush1.bf16.msra.mxu0 %v987
    %1292 = vmatprep.subr.bf16.mxu0 %v992
    %1293 = vmatpush1.bf16.msra.mxu0 %v991
    %1294 = vmatprep.subr.bf16.mxu0 %v996
    %1295 = vmatpush1.bf16.msra.mxu0 %v995
    %1296 = vmatprep.subr.bf16.mxu0 %v1000
    %1297 = vmatpush1.bf16.msra.mxu0 %v999
    %1298 = vmatprep.subr.bf16.mxu0 %v1004
    %1299 = vmatpush1.bf16.msra.mxu0 %v1003
    %1300 = vmatprep.subr.bf16.mxu0 %v1008
    %1301 = vmatpush1.bf16.msra.mxu0 %v1007
    %1302 = vmatprep.subr.bf16.mxu0 %v1012
    %1303 = vmatpush1.bf16.msra.mxu0 %v1011
    %1304 = vmatprep.subr.bf16.mxu0 %v1016
    %1305 = vmatpush1.bf16.msra.mxu0 %v1015
    %1306 = vmatprep.subr.bf16.mxu0 %v1020
    %1307 = vmatpush1.bf16.msra.mxu0 %v1019
    %1308 = vmatprep.subr.bf16.mxu0 %v1024
    %1309 = vmatpush1.bf16.msra.mxu0 %v1023
    %1310 = vmatprep.subr.bf16.mxu0 %v1028
    %1311 = vmatpush1.bf16.msra.mxu0 %v1027
    %1312 = vmatprep.mubr.bf16.mxu0 %v366
    %1313 = vmatmul.mubr.bf16.gmra.mrb[0].mxu0 %v365
    %v1314 = vpop.f32.mrb[0].mxu0
    %v1315 = vadd.f32 %v1274, %v1314
    %v1316 = vpop.f32.mrb[0].mxu0
    %v1317 = vadd.f32 %v1276, %v1316
    %v1318 = vpop.f32.mrb[0].mxu0
    %v1319 = vpop.f32.mrb[0].mxu0
    %1320 = vdwg.mxu0
    %v1321 = vrot.slane %v1233, 4
    %v1322 = vadd.f32 %v1233, %v1321
    %v1323 = vrot.slane %v1322, 2
    %v1324 = vadd.f32 %v1322, %v1323
    %v1325 = vrot.slane %v1324, 1
    %v1326 = vadd.f32 %v1324, %v1325
    %v1327 = vrot.slane %v1235, 4
    %v1328 = vadd.f32 %v1235, %v1327
    %v1329 = vrot.slane %v1328, 2
    %v1330 = vadd.f32 %v1328, %v1329
    %v1331 = vrot.slane %v1330, 1
    %v1332 = vadd.f32 %v1330, %v1331
    %v1333 = vrot.slane %v1315, 4
    %v1334 = vadd.f32 %v1315, %v1333
    %v1335 = vrot.slane %v1334, 2
    %v1336 = vadd.f32 %v1334, %v1335
    %v1337 = vrot.slane %v1336, 1
    %v1338 = vadd.f32 %v1336, %v1337
    %v1339 = vrot.slane %v1317, 4
    %v1340 = vadd.f32 %v1317, %v1339
    %v1341 = vrot.slane %v1340, 2
    %v1342 = vadd.f32 %v1340, %v1341
    %v1343 = vrot.slane %v1342, 1
    %v1344 = vadd.f32 %v1342, %v1343
    %v1345 = vmul.f32 %v1326, 0.125
    %v1346 = vmul.f32 %v1332, 0.125
    %v1347 = vmul.f32 %v1338, 0.125
    %v1348 = vmul.f32 %v1344, 0.125
    %v1349 = vmul.f32 %v1233, %v1233
    %v1350 = vmul.f32 %v1235, %v1235
    %v1351 = vmul.f32 %v1315, %v1315
    %v1352 = vmul.f32 %v1317, %v1317
    %v1353 = vrot.slane %v1349, 4
    %v1354 = vadd.f32 %v1349, %v1353
    %v1355 = vrot.slane %v1354, 2
    %v1356 = vadd.f32 %v1354, %v1355
    %v1357 = vrot.slane %v1356, 1
    %v1358 = vadd.f32 %v1356, %v1357
    %v1359 = vrot.slane %v1350, 4
    %v1360 = vadd.f32 %v1350, %v1359
    %v1361 = vrot.slane %v1360, 2
    %v1362 = vadd.f32 %v1360, %v1361
    %v1363 = vrot.slane %v1362, 1
    %v1364 = vadd.f32 %v1362, %v1363
    %v1365 = vrot.slane %v1351, 4
    %v1366 = vadd.f32 %v1351, %v1365
    %v1367 = vrot.slane %v1366, 2
    %v1368 = vadd.f32 %v1366, %v1367
    %v1369 = vrot.slane %v1368, 1
    %v1370 = vadd.f32 %v1368, %v1369
    %v1371 = vrot.slane %v1352, 4
    %v1372 = vadd.f32 %v1352, %v1371
    %v1373 = vrot.slane %v1372, 2
    %v1374 = vadd.f32 %v1372, %v1373
    %v1375 = vrot.slane %v1374, 1
    %v1376 = vadd.f32 %v1374, %v1375
    %v1377 = vmul.f32 %v1358, 0.125
    %v1378 = vmul.f32 %v1364, 0.125
    %v1379 = vmul.f32 %v1370, 0.125
    %v1380 = vmul.f32 %v1376, 0.125
    %v1381 = vmul.f32 %v1345, %v1345
    %v1382 = vmul.f32 %v1346, %v1346
    %v1383 = vmul.f32 %v1347, %v1347
    %v1384 = vmul.f32 %v1348, %v1348
    %v1385 = vsub.f32 %v1377, %v1381
    %v1386 = vsub.f32 %v1378, %v1382
    %v1387 = vsub.f32 %v1379, %v1383
    %v1388 = vsub.f32 %v1380, %v1384
    %v1389 = vmax.f32 %v1385, 0.0
    %v1390 = vmax.f32 %v1386, 0.0
    %v1391 = vmax.f32 %v1387, 0.0
    %v1392 = vmax.f32 %v1388, 0.0
    %v1393 = vadd.f32 %v1389, 1e-05
    %v1394 = vadd.f32 %v1390, 1e-05
    %v1395 = vadd.f32 %v1391, 1e-05
    %v1396 = vadd.f32 %v1392, 1e-05
    %v1397 = vrsqrt.pop %v1393
    %v1398 = vrsqrt.pop %v1394
    %v1399 = vrsqrt.pop %v1395
    %v1400 = vrsqrt.pop %v1396
    %v1401 = vld [vmem:[%s4] sm:$0xf]
    %v1406 = vcombine.low %v1397, %v1398
    %v1407 = vcombine.low %v1399, %v1400
    %v1409 = vunpack.c.l.s4 1966171168
    %v1410 = vunpack.c.0.s8 %v1409
    %v1411 = vlaneseq
    %v1412 = vshrl.u32 %v1411, 7
    %v1413 = vsub.s32 %v1410, %v1412
    %v1414 = vrot.slane %v1406, %v1413
    %v1416 = vunpack.c.l.s4 1966171168
    %v1417 = vunpack.c.0.s8 %v1416
    %v1418 = vlaneseq
    %v1419 = vshrl.u32 %v1418, 7
    %v1420 = vsub.s32 %v1417, %v1419
    %v1421 = vrot.slane %v1407, %v1420
    %v1422 = vcombine.low %v1414, %v1421
    %v1424 = vunpack.c.l.s4 1966171168
    %v1425 = vunpack.c.0.s8 %v1424
    %v1426 = vlaneseq
    %v1427 = vshrl.u32 %v1426, 7
    %v1428 = vsub.s32 %v1425, %v1427
    %v1429 = vrot.slane %v1422, %v1428
    %v1431 = vmul.f32 %v1401, %v1429
    %v1432 = vld [vmem:[%s5] sm:$0xf]
    %v1434 = vlaneseq
    %v1435 = vshrl.u32 %v1434, 7
    %v1436 = vsub.s32 0, %v1435
    %v1437 = vrot.slane %v1431, %v1436
    %v1438 = vlaneseq
    %v1439 = vshrl.u32 %v1438, 7
    %v1440 = vsub.s32 1, %v1439
    %v1441 = vrot.slane %v1431, %v1440
    %v1442 = vlaneseq
    %v1443 = vshrl.u32 %v1442, 7
    %v1444 = vsub.s32 2, %v1443
    %v1445 = vrot.slane %v1431, %v1444
    %v1446 = vlaneseq
    %v1447 = vshrl.u32 %v1446, 7
    %v1448 = vsub.s32 3, %v1447
    %v1449 = vrot.slane %v1431, %v1448
    %v1454 = vmul.f32 %v1345, %v1437
    %v1455 = vmul.f32 %v1346, %v1441
    %v1456 = vmul.f32 %v1347, %v1445
    %v1457 = vmul.f32 %v1348, %v1449
    %v1462 = vcombine.low %v1454, %v1455
    %v1463 = vcombine.low %v1456, %v1457
    %v1465 = vunpack.c.l.s4 1966171168
    %v1466 = vunpack.c.0.s8 %v1465
    %v1467 = vlaneseq
    %v1468 = vshrl.u32 %v1467, 7
    %v1469 = vsub.s32 %v1466, %v1468
    %v1470 = vrot.slane %v1462, %v1469
    %v1472 = vunpack.c.l.s4 1966171168
    %v1473 = vunpack.c.0.s8 %v1472
    %v1474 = vlaneseq
    %v1475 = vshrl.u32 %v1474, 7
    %v1476 = vsub.s32 %v1473, %v1475
    %v1477 = vrot.slane %v1463, %v1476
    %v1478 = vcombine.low %v1470, %v1477
    %v1480 = vunpack.c.l.s4 1966171168
    %v1481 = vunpack.c.0.s8 %v1480
    %v1482 = vlaneseq
    %v1483 = vshrl.u32 %v1482, 7
    %v1484 = vsub.s32 %v1481, %v1483
    %v1485 = vrot.slane %v1478, %v1484
    %v1487 = vsub.f32 %v1432, %v1485
    %v1488 = vmul.f32 %v1233, %v1437
    %v1489 = vmul.f32 %v1235, %v1441
    %v1490 = vmul.f32 %v1315, %v1445
    %v1491 = vmul.f32 %v1317, %v1449
    %v1493 = vlaneseq
    %v1494 = vshrl.u32 %v1493, 7
    %v1495 = vsub.s32 0, %v1494
    %v1496 = vrot.slane %v1487, %v1495
    %v1497 = vlaneseq
    %v1498 = vshrl.u32 %v1497, 7
    %v1499 = vsub.s32 1, %v1498
    %v1500 = vrot.slane %v1487, %v1499
    %v1501 = vlaneseq
    %v1502 = vshrl.u32 %v1501, 7
    %v1503 = vsub.s32 2, %v1502
    %v1504 = vrot.slane %v1487, %v1503
    %v1505 = vlaneseq
    %v1506 = vshrl.u32 %v1505, 7
    %v1507 = vsub.s32 3, %v1506
    %v1508 = vrot.slane %v1487, %v1507
    %v1513 = vadd.f32 %v1488, %v1496
    %v1514 = vadd.f32 %v1489, %v1500
    %v1515 = vadd.f32 %v1490, %v1504
    %v1516 = vadd.f32 %v1491, %v1508
    %v1517 = vmax.f32 %v1513, 0.0
    %v1518 = vmax.f32 %v1514, 0.0
    %v1519 = vmax.f32 %v1515, 0.0
    %v1520 = vmax.f32 %v1516, 0.0
    %v1521 = vpack.c.bf16 %v1517, %v1517
    %v1522 = vpack.c.bf16 %v1518, %v1518
    %v1523 = vpack.c.bf16 %v1519, %v1519
    %v1524 = vpack.c.bf16 %v1520, %v1520
    %v1525 = vld [vmem:[#allocation8] sm:$0xf]
    %v1526 = vld [vmem:[#allocation8 + $0x4] sm:$0xf]
    %v1527 = vld [vmem:[#allocation8 + $0x8] sm:$0xf]
    %v1528 = vld [vmem:[#allocation8 + $0xc] sm:$0xf]
    %v1529 = vld [vmem:[#allocation8 + $0x10] sm:$0xf]
    %v1530 = vld [vmem:[#allocation8 + $0x14] sm:$0xf]
    %v1531 = vld [vmem:[#allocation8 + $0x18] sm:$0xf]
    %v1532 = vld [vmem:[#allocation8 + $0x1c] sm:$0xf]
    %v1533 = vld [vmem:[#allocation8 + $0x20] sm:$0xf]
    %v1534 = vld [vmem:[#allocation8 + $0x24] sm:$0xf]
    %v1535 = vld [vmem:[#allocation8 + $0x28] sm:$0xf]
    %v1536 = vld [vmem:[#allocation8 + $0x2c] sm:$0xf]
    %v1537 = vld [vmem:[#allocation8 + $0x30] sm:$0xf]
    %v1538 = vld [vmem:[#allocation8 + $0x34] sm:$0xf]
    %v1539 = vld [vmem:[#allocation8 + $0x38] sm:$0xf]
    %v1540 = vld [vmem:[#allocation8 + $0x3c] sm:$0xf]
    %v1541 = vld [vmem:[#allocation8 + $0x40] sm:$0xf]
    %v1542 = vld [vmem:[#allocation8 + $0x44] sm:$0xf]
    %v1543 = vld [vmem:[#allocation8 + $0x48] sm:$0xf]
    %v1544 = vld [vmem:[#allocation8 + $0x4c] sm:$0xf]
    %v1545 = vld [vmem:[#allocation8 + $0x50] sm:$0xf]
    %v1546 = vld [vmem:[#allocation8 + $0x54] sm:$0xf]
    %v1547 = vld [vmem:[#allocation8 + $0x58] sm:$0xf]
    %v1548 = vld [vmem:[#allocation8 + $0x5c] sm:$0xf]
    %v1549 = vld [vmem:[#allocation8 + $0x60] sm:$0xf]
    %v1550 = vld [vmem:[#allocation8 + $0x64] sm:$0xf]
    %v1551 = vld [vmem:[#allocation8 + $0x68] sm:$0xf]
    %v1552 = vld [vmem:[#allocation8 + $0x6c] sm:$0xf]
    %v1553 = vld [vmem:[#allocation8 + $0x70] sm:$0xf]
    %v1554 = vld [vmem:[#allocation8 + $0x74] sm:$0xf]
    %v1555 = vld [vmem:[#allocation8 + $0x78] sm:$0xf]
    %v1556 = vld [vmem:[#allocation8 + $0x7c] sm:$0xf]
    %v1557 = vld [vmem:[#allocation8 + $0x80] sm:$0xf]
    %v1558 = vld [vmem:[#allocation8 + $0x84] sm:$0xf]
    %v1559 = vld [vmem:[#allocation8 + $0x88] sm:$0xf]
    %v1560 = vld [vmem:[#allocation8 + $0x8c] sm:$0xf]
    %v1561 = vld [vmem:[#allocation8 + $0x90] sm:$0xf]
    %v1562 = vld [vmem:[#allocation8 + $0x94] sm:$0xf]
    %v1563 = vld [vmem:[#allocation8 + $0x98] sm:$0xf]
    %v1564 = vld [vmem:[#allocation8 + $0x9c] sm:$0xf]
    %v1565 = vld [vmem:[#allocation8 + $0xa0] sm:$0xf]
    %v1566 = vld [vmem:[#allocation8 + $0xa4] sm:$0xf]
    %v1567 = vld [vmem:[#allocation8 + $0xa8] sm:$0xf]
    %v1568 = vld [vmem:[#allocation8 + $0xac] sm:$0xf]
    %v1569 = vld [vmem:[#allocation8 + $0xb0] sm:$0xf]
    %v1570 = vld [vmem:[#allocation8 + $0xb4] sm:$0xf]
    %v1571 = vld [vmem:[#allocation8 + $0xb8] sm:$0xf]
    %v1572 = vld [vmem:[#allocation8 + $0xbc] sm:$0xf]
    %v1573 = vld [vmem:[#allocation8 + $0xc0] sm:$0xf]
    %v1574 = vld [vmem:[#allocation8 + $0xc4] sm:$0xf]
    %v1575 = vld [vmem:[#allocation8 + $0xc8] sm:$0xf]
    %v1576 = vld [vmem:[#allocation8 + $0xcc] sm:$0xf]
    %v1577 = vld [vmem:[#allocation8 + $0xd0] sm:$0xf]
    %v1578 = vld [vmem:[#allocation8 + $0xd4] sm:$0xf]
    %v1579 = vld [vmem:[#allocation8 + $0xd8] sm:$0xf]
    %v1580 = vld [vmem:[#allocation8 + $0xdc] sm:$0xf]
    %v1581 = vld [vmem:[#allocation8 + $0xe0] sm:$0xf]
    %v1582 = vld [vmem:[#allocation8 + $0xe4] sm:$0xf]
    %v1583 = vld [vmem:[#allocation8 + $0xe8] sm:$0xf]
    %v1584 = vld [vmem:[#allocation8 + $0xec] sm:$0xf]
    %v1585 = vld [vmem:[#allocation8 + $0xf0] sm:$0xf]
    %v1586 = vld [vmem:[#allocation8 + $0xf4] sm:$0xf]
    %v1587 = vld [vmem:[#allocation8 + $0xf8] sm:$0xf]
    %v1588 = vld [vmem:[#allocation8 + $0xfc] sm:$0xf]
    %v1589 = vld [vmem:[%s7] sm:$0x1]
    %v1591 = vlaneseq
    %v1592 = vshrl.u32 %v1591, 7
    %v1593 = vsub.s32 0, %v1592
    %v1594 = vrot.slane %v1589, %v1593
    %v1660 = vunpack.c.l.b16 %v1525
    %v1661 = vunpack.c.l.b16 %v1526
    %v1662 = vunpack.c.l.b16 %v1527
    %v1663 = vunpack.c.l.b16 %v1528
    %v1664 = vunpack.c.l.b16 %v1529
    %v1665 = vunpack.c.l.b16 %v1530
    %v1666 = vunpack.c.l.b16 %v1531
    %v1667 = vunpack.c.l.b16 %v1532
    %v1668 = vunpack.c.l.b16 %v1533
    %v1669 = vunpack.c.l.b16 %v1534
    %v1670 = vunpack.c.l.b16 %v1535
    %v1671 = vunpack.c.l.b16 %v1536
    %v1672 = vunpack.c.l.b16 %v1537
    %v1673 = vunpack.c.l.b16 %v1538
    %v1674 = vunpack.c.l.b16 %v1539
    %v1675 = vunpack.c.l.b16 %v1540
    %v1676 = vunpack.c.l.b16 %v1541
    %v1677 = vunpack.c.l.b16 %v1542
    %v1678 = vunpack.c.l.b16 %v1543
    %v1679 = vunpack.c.l.b16 %v1544
    %v1680 = vunpack.c.l.b16 %v1545
    %v1681 = vunpack.c.l.b16 %v1546
    %v1682 = vunpack.c.l.b16 %v1547
    %v1683 = vunpack.c.l.b16 %v1548
    %v1684 = vunpack.c.l.b16 %v1549
    %v1685 = vunpack.c.l.b16 %v1550
    %v1686 = vunpack.c.l.b16 %v1551
    %v1687 = vunpack.c.l.b16 %v1552
    %v1688 = vunpack.c.l.b16 %v1553
    %v1689 = vunpack.c.l.b16 %v1554
    %v1690 = vunpack.c.l.b16 %v1555
    %v1691 = vunpack.c.l.b16 %v1556
    %v1692 = vunpack.c.l.b16 %v1557
    %v1693 = vunpack.c.l.b16 %v1558
    %v1694 = vunpack.c.l.b16 %v1559
    %v1695 = vunpack.c.l.b16 %v1560
    %v1696 = vunpack.c.l.b16 %v1561
    %v1697 = vunpack.c.l.b16 %v1562
    %v1698 = vunpack.c.l.b16 %v1563
    %v1699 = vunpack.c.l.b16 %v1564
    %v1700 = vunpack.c.l.b16 %v1565
    %v1701 = vunpack.c.l.b16 %v1566
    %v1702 = vunpack.c.l.b16 %v1567
    %v1703 = vunpack.c.l.b16 %v1568
    %v1704 = vunpack.c.l.b16 %v1569
    %v1705 = vunpack.c.l.b16 %v1570
    %v1706 = vunpack.c.l.b16 %v1571
    %v1707 = vunpack.c.l.b16 %v1572
    %v1708 = vunpack.c.l.b16 %v1573
    %v1709 = vunpack.c.l.b16 %v1574
    %v1710 = vunpack.c.l.b16 %v1575
    %v1711 = vunpack.c.l.b16 %v1576
    %v1712 = vunpack.c.l.b16 %v1577
    %v1713 = vunpack.c.l.b16 %v1578
    %v1714 = vunpack.c.l.b16 %v1579
    %v1715 = vunpack.c.l.b16 %v1580
    %v1716 = vunpack.c.l.b16 %v1581
    %v1717 = vunpack.c.l.b16 %v1582
    %v1718 = vunpack.c.l.b16 %v1583
    %v1719 = vunpack.c.l.b16 %v1584
    %v1720 = vunpack.c.l.b16 %v1585
    %v1721 = vunpack.c.l.b16 %v1586
    %v1722 = vunpack.c.l.b16 %v1587
    %v1723 = vunpack.c.l.b16 %v1588
    %v1724 = vpack.c.b16 %v1661, %v1660
    %v1725 = vpack.c.b16 %v1663, %v1662
    %v1726 = vpack.c.b16 %v1665, %v1664
    %v1727 = vpack.c.b16 %v1667, %v1666
    %v1728 = vpack.c.b16 %v1669, %v1668
    %v1729 = vpack.c.b16 %v1671, %v1670
    %v1730 = vpack.c.b16 %v1673, %v1672
    %v1731 = vpack.c.b16 %v1675, %v1674
    %v1732 = vpack.c.b16 %v1677, %v1676
    %v1733 = vpack.c.b16 %v1679, %v1678
    %v1734 = vpack.c.b16 %v1681, %v1680
    %v1735 = vpack.c.b16 %v1683, %v1682
    %v1736 = vpack.c.b16 %v1685, %v1684
    %v1737 = vpack.c.b16 %v1687, %v1686
    %v1738 = vpack.c.b16 %v1689, %v1688
    %v1739 = vpack.c.b16 %v1691, %v1690
    %v1740 = vpack.c.b16 %v1693, %v1692
    %v1741 = vpack.c.b16 %v1695, %v1694
    %v1742 = vpack.c.b16 %v1697, %v1696
    %v1743 = vpack.c.b16 %v1699, %v1698
    %v1744 = vpack.c.b16 %v1701, %v1700
    %v1745 = vpack.c.b16 %v1703, %v1702
    %v1746 = vpack.c.b16 %v1705, %v1704
    %v1747 = vpack.c.b16 %v1707, %v1706
    %v1748 = vpack.c.b16 %v1709, %v1708
    %v1749 = vpack.c.b16 %v1711, %v1710
    %v1750 = vpack.c.b16 %v1713, %v1712
    %v1751 = vpack.c.b16 %v1715, %v1714
    %v1752 = vpack.c.b16 %v1717, %v1716
    %v1753 = vpack.c.b16 %v1719, %v1718
    %v1754 = vpack.c.b16 %v1721, %v1720
    %v1755 = vpack.c.b16 %v1723, %v1722
    %1788 = vmatprep.subr.bf16.mxu0 0
    %1789 = vmatpush1.bf16.msra.mxu0 %v1724
    %1790 = vmatprep.subr.bf16.mxu0 0
    %1791 = vmatpush1.bf16.msra.mxu0 %v1725
    %1792 = vmatprep.subr.bf16.mxu0 0
    %1793 = vmatpush1.bf16.msra.mxu0 %v1726
    %1794 = vmatprep.subr.bf16.mxu0 0
    %1795 = vmatpush1.bf16.msra.mxu0 %v1727
    %1796 = vmatprep.subr.bf16.mxu0 0
    %1797 = vmatpush1.bf16.msra.mxu0 %v1728
    %1798 = vmatprep.subr.bf16.mxu0 0
    %1799 = vmatpush1.bf16.msra.mxu0 %v1729
    %1800 = vmatprep.subr.bf16.mxu0 0
    %1801 = vmatpush1.bf16.msra.mxu0 %v1730
    %1802 = vmatprep.subr.bf16.mxu0 0
    %1803 = vmatpush1.bf16.msra.mxu0 %v1731
    %1804 = vmatprep.subr.bf16.mxu0 0
    %1805 = vmatpush1.bf16.msra.mxu0 %v1732
    %1806 = vmatprep.subr.bf16.mxu0 0
    %1807 = vmatpush1.bf16.msra.mxu0 %v1733
    %1808 = vmatprep.subr.bf16.mxu0 0
    %1809 = vmatpush1.bf16.msra.mxu0 %v1734
    %1810 = vmatprep.subr.bf16.mxu0 0
    %1811 = vmatpush1.bf16.msra.mxu0 %v1735
    %1812 = vmatprep.subr.bf16.mxu0 0
    %1813 = vmatpush1.bf16.msra.mxu0 %v1736
    %1814 = vmatprep.subr.bf16.mxu0 0
    %1815 = vmatpush1.bf16.msra.mxu0 %v1737
    %1816 = vmatprep.subr.bf16.mxu0 0
    %1817 = vmatpush1.bf16.msra.mxu0 %v1738
    %1818 = vmatprep.subr.bf16.mxu0 0
    %1819 = vmatpush1.bf16.msra.mxu0 %v1739
    %1820 = vmatprep.mubr.bf16.mxu0 %v1522
    %1821 = vmatmul.mubr.bf16.gmra.mrb[0].mxu0 %v1521
    %v1822 = vpop.f32.mrb[0].mxu0
    %v1823 = vadd.f32 %v1594, %v1822
    %v1824 = vpop.f32.mrb[0].mxu0
    %v1825 = vpop.f32.mrb[0].mxu0
    %v1826 = vpop.f32.mrb[0].mxu0
    %1827 = vdwg.mxu0
    %1828 = vmatprep.subr.bf16.mxu0 0
    %1829 = vmatpush1.bf16.msra.mxu0 %v1740
    %1830 = vmatprep.subr.bf16.mxu0 0
    %1831 = vmatpush1.bf16.msra.mxu0 %v1741
    %1832 = vmatprep.subr.bf16.mxu0 0
    %1833 = vmatpush1.bf16.msra.mxu0 %v1742
    %1834 = vmatprep.subr.bf16.mxu0 0
    %1835 = vmatpush1.bf16.msra.mxu0 %v1743
    %1836 = vmatprep.subr.bf16.mxu0 0
    %1837 = vmatpush1.bf16.msra.mxu0 %v1744
    %1838 = vmatprep.subr.bf16.mxu0 0
    %1839 = vmatpush1.bf16.msra.mxu0 %v1745
    %1840 = vmatprep.subr.bf16.mxu0 0
    %1841 = vmatpush1.bf16.msra.mxu0 %v1746
    %1842 = vmatprep.subr.bf16.mxu0 0
    %1843 = vmatpush1.bf16.msra.mxu0 %v1747
    %1844 = vmatprep.subr.bf16.mxu0 0
    %1845 = vmatpush1.bf16.msra.mxu0 %v1748
    %1846 = vmatprep.subr.bf16.mxu0 0
    %1847 = vmatpush1.bf16.msra.mxu0 %v1749
    %1848 = vmatprep.subr.bf16.mxu0 0
    %1849 = vmatpush1.bf16.msra.mxu0 %v1750
    %1850 = vmatprep.subr.bf16.mxu0 0
    %1851 = vmatpush1.bf16.msra.mxu0 %v1751
    %1852 = vmatprep.subr.bf16.mxu0 0
    %1853 = vmatpush1.bf16.msra.mxu0 %v1752
    %1854 = vmatprep.subr.bf16.mxu0 0
    %1855 = vmatpush1.bf16.msra.mxu0 %v1753
    %1856 = vmatprep.subr.bf16.mxu0 0
    %1857 = vmatpush1.bf16.msra.mxu0 %v1754
    %1858 = vmatprep.subr.bf16.mxu0 0
    %1859 = vmatpush1.bf16.msra.mxu0 %v1755
    %1860 = vmatprep.mubr.bf16.mxu0 %v1524
    %1861 = vmatmul.mubr.bf16.gmra.mrb[0].mxu0 %v1523
    %v1862 = vpop.f32.mrb[0].mxu0
    %v1863 = vadd.f32 %v1823, %v1862
    %v1864 = vpop.f32.mrb[0].mxu0
    %v1865 = vpop.f32.mrb[0].mxu0
    %v1866 = vpop.f32.mrb[0].mxu0
    %1867 = vdwg.mxu0
    %1868 = vst [vmem:[#allocation10] sm:$0xff] %v1863
    // Predicated region
    $region50: #{tpu_custom_call.1} parent=1 // pred_check
      _
    $region51: #{tpu_custom_call.1} parent=1 // pred_check_branch
      %1870 = sbr.rel (0) target = $region53
    $region52: #{tpu_custom_call.1} parent=1 // pred_region
      %s1872 = ssub.s32 128, 128
      %1873 = vsyncadd [#allocation4], %s1872
      %s1875 = sshll.u32 [#allocation10], 4
      %s1876 = int_to_ptr.vmem [resolvable:$true] %s1875
      %1878 = dma.vmem_to_hbm [thread:$0]  %s1876, 128, %s8, [#allocation4]
    $region53: #{tpu_custom_call.1} parent=1 // pred_fallthru
      _
    // Predicated region
    $region54: #{tpu_custom_call.1} parent=1 // pred_check
      _
    $region55: #{tpu_custom_call.1} parent=1 // pred_check_branch
      %1880 = sbr.rel (0) target = $region57
    $region56: #{tpu_custom_call.1} parent=1 // pred_region
      %1881 = dma.done [#allocation4], 128
    $region57: #{tpu_custom_call.1} parent=1 // pred_fallthru
      _
    %1882 = vsyncpa [#allocation3], 1
    %1883 = vsyncpa [#allocation6], 1
    %1884 = vsyncpa [#allocation9], 1
    %1885 = vsyncpa [#allocation4], 1

</llo_original>
